<compile_context>
chip_gen: v5e
topology: v5e:2x2
jax: 0.10.0
libtpu: 0.0.40
codegen_flags: <defaults>
</compile_context>

<pallas_src>
import numpy as np
import jax
import jax.numpy as jnp
from jax.experimental import pallas as pl
from jax.experimental.pallas import tpu as pltpu

VOCAB = 50
HIDDEN = 32
BATCH = 2
SEQ = 8

LANE = 128


def _round_up(x, m):
    return ((x + m - 1) // m) * m


# ------------------------------------------------------------------ fused kernel
def decoder_kernel(ids_ref, lens_ref, h0_ref, embed_ref, wih_ref, whh_ref,
                   bih_ref, bhh_ref, wout_ref, bout_ref,
                   logp_ref, hfin_ref, hid_buf):
    B, HP = h0_ref.shape
    TB = ids_ref.shape[0]
    T = TB // B
    VP = embed_ref.shape[0]

    # -- embedding gather as a one-hot matmul (table lives in VMEM), time-major rows.
    ids = ids_ref[...]                                            # (T*B, 1) int32
    vocab_iota = jax.lax.broadcasted_iota(jnp.int32, (TB, VP), 1)
    onehot = (vocab_iota == ids).astype(jnp.float32)              # (T*B, VP)
    emb = jnp.dot(onehot, embed_ref[...], preferred_element_type=jnp.float32)
    # TODO(synk): training-mode dropout (p=0.2) would need pltpu.prng_*; inference identity here.

    # -- all input-gate contributions precomputed outside the recurrence.
    gi_all = jnp.dot(emb, wih_ref[...],
                     preferred_element_type=jnp.float32) + bih_ref[...]   # (T*B, 3*HP)

    # -- loop-invariant loads hoisted above the recurrence.
    w_hh = whh_ref[...]
    b_hh = bhh_ref[...]
    lens = lens_ref[...]                                          # (B, 1) int32

    h = h0_ref[...]                                               # (B, HP)
    for t in range(T):                                            # static, fully unrolled
        gi = gi_all[t * B:(t + 1) * B, :]                         # (B, 3*HP)
        gh = jnp.dot(h, w_hh, preferred_element_type=jnp.float32) + b_hh
        # gate slices are lane-aligned: gate g lives at lanes [g*HP, (g+1)*HP)
        r = jax.nn.sigmoid(gi[:, 0:HP] + gh[:, 0:HP])
        z = jax.nn.sigmoid(gi[:, HP:2 * HP] + gh[:, HP:2 * HP])
        n = jnp.tanh(gi[:, 2 * HP:3 * HP] + r * gh[:, 2 * HP:3 * HP])
        h_t = (1.0 - z) * n + z * h
        valid = t < lens                                          # (B, 1) bool
        out_t = jnp.where(valid, h_t, 0.0)                        # padded positions -> 0
        h = jnp.where(valid, h_t, h)                              # freeze past seq length
        # scatter the B rows into the batch-major hidden slab (row = b*T + t)
        for b in range(B):
            hid_buf[pl.ds(b * T + t, 1), :] = out_t[b:b + 1, :]

    hfin_ref[...] = h.astype(hfin_ref.dtype)

    # -- output projection + log_softmax over padded vocab lanes (lane-dense store).
    hidden = hid_buf[...]                                         # (B*T, HP) batch-major
    logits = jnp.dot(hidden, wout_ref[...],
                     preferred_element_type=jnp.float32) + bout_ref[...]  # (B*T, VP)
    m = jnp.max(logits, axis=-1, keepdims=True)
    s = logits - m
    lse = jnp.log(jnp.sum(jnp.exp(s), axis=-1, keepdims=True))
    logp_ref[...] = (s - lse).astype(logp_ref.dtype)


# ------------------------------------------------------------------ wrapper
def plain_decoder_forward(y, y_lengths, hid, params):
    """y: (B, T) int32 token ids; y_lengths: host-known lengths; hid: (1, B, H)."""
    B, T = y.shape
    V, H = params["embed"].shape
    HP = _round_up(H, LANE)
    VP = _round_up(V, LANE)
    T_out = int(np.max(np.asarray(y_lengths)))                   # pad_packed_sequence length

    # ---- parameter prep (would be done once in practice): pad to lane-aligned shapes,
    #      placing each GRU gate (PyTorch order [r, z, n]) at a 128-lane-aligned offset.
    embed_pad = jnp.zeros((VP, HP), jnp.float32).at[:V, :H].set(params["embed"])
    w_ih_pad = jnp.zeros((HP, 3 * HP), jnp.float32)
    w_hh_pad = jnp.zeros((HP, 3 * HP), jnp.float32)
    b_ih_pad = jnp.zeros((1, 3 * HP), jnp.float32)
    b_hh_pad = jnp.zeros((1, 3 * HP), jnp.float32)
    for g in range(3):
        w_ih_pad = w_ih_pad.at[:H, g * HP:g * HP + H].set(params["w_ih"][g * H:(g + 1) * H, :].T)
        w_hh_pad = w_hh_pad.at[:H, g * HP:g * HP + H].set(params["w_hh"][g * H:(g + 1) * H, :].T)
        b_ih_pad = b_ih_pad.at[0, g * HP:g * HP + H].set(params["b_ih"][g * H:(g + 1) * H])
        b_hh_pad = b_hh_pad.at[0, g * HP:g * HP + H].set(params["b_hh"][g * H:(g + 1) * H])
    w_out_pad = jnp.zeros((HP, VP), jnp.float32).at[:H, :V].set(params["w_out"].T)
    # padded vocab lanes get a huge negative bias so log_softmax ignores them
    b_out_pad = jnp.full((1, VP), -1e30, jnp.float32).at[0, :V].set(params["b_out"])

    ids_tm = y.T.reshape(T * B, 1).astype(jnp.int32)              # time-major token ids
    lens = jnp.asarray(np.asarray(y_lengths), jnp.int32).reshape(B, 1)
    h0_pad = jnp.zeros((B, HP), jnp.float32).at[:, :H].set(hid[0])

    vmem = pl.BlockSpec(memory_space=pltpu.MemorySpace.VMEM)
    logp_pad, hfin_pad = pl.pallas_call(
        decoder_kernel,
        out_shape=(jax.ShapeDtypeStruct((B * T, VP), jnp.float32),
                   jax.ShapeDtypeStruct((B, HP), jnp.float32)),
        in_specs=[vmem] * 10,
        out_specs=(vmem, vmem),
        scratch_shapes=[pltpu.VMEM((B * T, HP), jnp.float32)],
    )(ids_tm, lens, h0_pad, embed_pad, w_ih_pad, w_hh_pad,
      b_ih_pad, b_hh_pad, w_out_pad, b_out_pad)

    output = logp_pad.reshape(B, T, VP)[:, :T_out, :V]            # (B, T_out, V)
    h_fin = hfin_pad[:, :H]                                       # (B, H)
    return output, h_fin[None]                                    # hid: (1, B, H)


# ------------------------------------------------------------------ params
def init_params(key, vocab, hidden):
    ks = jax.random.split(key, 7)
    bound = 1.0 / np.sqrt(hidden)
    u = lambda k, shape: jax.random.uniform(k, shape, jnp.float32, -bound, bound)
    return dict(
        embed=jax.random.normal(ks[0], (vocab, hidden), jnp.float32),
        w_ih=u(ks[1], (3 * hidden, hidden)),   # PyTorch GRU weight_ih_l0 (3H, H), gates [r,z,n]
        w_hh=u(ks[2], (3 * hidden, hidden)),
        b_ih=u(ks[3], (3 * hidden,)),
        b_hh=u(ks[4], (3 * hidden,)),
        w_out=u(ks[5], (vocab, hidden)),       # nn.Linear(hidden, vocab).weight
        b_out=u(ks[6], (vocab,)),
    )


# --------------------------------------------------------------- JAX reference
def reference_forward(y, y_lengths, hid, params):
    emb = params["embed"][y]
    B, T, H = emb.shape
    T_out = int(np.max(np.asarray(y_lengths)))
    lens = jnp.asarray(np.asarray(y_lengths), jnp.int32)

    def step(h, inputs):
        x_t, m_t = inputs
        gi = x_t @ params["w_ih"].T + params["b_ih"]
        gh = h @ params["w_hh"].T + params["b_hh"]
        r = jax.nn.sigmoid(gi[:, :H] + gh[:, :H])
        z = jax.nn.sigmoid(gi[:, H:2 * H] + gh[:, H:2 * H])
        n = jnp.tanh(gi[:, 2 * H:] + r * gh[:, 2 * H:])
        h_t = (1 - z) * n + z * h
        h_new = m_t * h_t + (1 - m_t) * h
        return h_new, m_t * h_t

    mask = (jnp.arange(T)[:, None] < lens[None, :]).astype(jnp.float32)[:, :, None]
    x_tbh = jnp.transpose(emb, (1, 0, 2))
    h_fin, outs = jax.lax.scan(step, hid[0], (x_tbh, mask))
    unpacked = jnp.transpose(outs[:T_out], (1, 0, 2))
    logits = unpacked @ params["w_out"].T + params["b_out"]
    return jax.nn.log_softmax(logits, -1), h_fin[None]


if __name__ == "__main__":
    key = jax.random.PRNGKey(0)
    k_par, k_y, k_h = jax.random.split(key, 3)

    params = init_params(k_par, VOCAB, HIDDEN)
    y = jax.random.randint(k_y, (BATCH, SEQ), 0, VOCAB, dtype=jnp.int32)
    y_lengths = [SEQ, SEQ - 3]                       # host-known, like pack_padded_sequence
    hid = jax.random.normal(k_h, (1, BATCH, HIDDEN), jnp.float32)

    output, hid_out = plain_decoder_forward(y, y_lengths, hid, params)
    output, hid_out = jax.block_until_ready((output, hid_out))

    ref_out, ref_hid = reference_forward(y, y_lengths, hid, params)

    assert output.shape == (BATCH, SEQ, VOCAB)
    assert hid_out.shape == (1, BATCH, HIDDEN)
    assert np.all(np.isfinite(np.asarray(output)))
    # log_softmax rows must normalize to probability 1
    assert np.allclose(np.exp(np.asarray(output)).sum(-1), 1.0, atol=1e-3)
    assert np.allclose(np.asarray(output), np.asarray(ref_out), atol=2e-2, rtol=1e-2)
    assert np.allclose(np.asarray(hid_out), np.asarray(ref_hid), atol=2e-2, rtol=1e-2)

    print("KERNEL_OK")
</pallas_src>

<mosaic_0001>
module attributes {stable_mosaic.version = 11 : i64} {
  func.func @decoder_kernel(%arg0: memref<16x1xi32, #tpu.memory_space<vmem>>, %arg1: memref<2x1xi32, #tpu.memory_space<vmem>>, %arg2: memref<2x128xf32, #tpu.memory_space<vmem>>, %arg3: memref<128x128xf32, #tpu.memory_space<vmem>>, %arg4: memref<128x384xf32, #tpu.memory_space<vmem>>, %arg5: memref<128x384xf32, #tpu.memory_space<vmem>>, %arg6: memref<1x384xf32, #tpu.memory_space<vmem>>, %arg7: memref<1x384xf32, #tpu.memory_space<vmem>>, %arg8: memref<128x128xf32, #tpu.memory_space<vmem>>, %arg9: memref<1x128xf32, #tpu.memory_space<vmem>>, %arg10: memref<16x128xf32, #tpu.memory_space<vmem>>, %arg11: memref<2x128xf32, #tpu.memory_space<vmem>>, %arg12: memref<16x128xf32, #tpu.memory_space<vmem>>) attributes {dimension_semantics = [], scalar_prefetch = 0 : i64, scratch_operands = 1 : i64, tpu.core_type = #tpu.core_type<tc>} {
    %c0 = arith.constant 0 : index
    %c0_0 = arith.constant 0 : index
    %0 = vector.load %arg0[%c0, %c0_0] : memref<16x1xi32, #tpu.memory_space<vmem>>, vector<16x1xi32>
    %1 = tpu.iota {dimensions = array<i32: 1>} : vector<16x128xi32>
    %2 = vector.broadcast %0 : vector<16x1xi32> to vector<16x128xi32>
    %3 = arith.cmpi eq, %1, %2 : vector<16x128xi32>
    %4 = arith.extui %3 : vector<16x128xi1> to vector<16x128xi32>
    %5 = arith.sitofp %4 : vector<16x128xi32> to vector<16x128xf32>
    %c0_1 = arith.constant 0 : index
    %c0_2 = arith.constant 0 : index
    %6 = vector.load %arg3[%c0_1, %c0_2] : memref<128x128xf32, #tpu.memory_space<vmem>>, vector<128x128xf32>
    %cst = arith.constant dense<0.000000e+00> : vector<16x128xf32>
    %7 = tpu.matmul %5, %6, %cst {dimension_numbers = #tpu.dot_dimension_numbers<[1], [0], [0], [1], [0, 0, 1, 1], [], []>} : vector<16x128xf32>, vector<128x128xf32>, vector<16x128xf32> -> vector<16x128xf32>
    %c0_3 = arith.constant 0 : index
    %c0_4 = arith.constant 0 : index
    %8 = vector.load %arg4[%c0_3, %c0_4] : memref<128x384xf32, #tpu.memory_space<vmem>>, vector<128x384xf32>
    %cst_5 = arith.constant dense<0.000000e+00> : vector<16x384xf32>
    %9 = tpu.matmul %7, %8, %cst_5 {dimension_numbers = #tpu.dot_dimension_numbers<[1], [0], [0], [1], [0, 0, 1, 1], [], []>} : vector<16x128xf32>, vector<128x384xf32>, vector<16x384xf32> -> vector<16x384xf32>
    %c0_6 = arith.constant 0 : index
    %c0_7 = arith.constant 0 : index
    %10 = vector.load %arg6[%c0_6, %c0_7] : memref<1x384xf32, #tpu.memory_space<vmem>>, vector<1x384xf32>
    %11 = vector.broadcast %10 : vector<1x384xf32> to vector<16x384xf32>
    %12 = arith.addf %9, %11 : vector<16x384xf32>
    %c0_8 = arith.constant 0 : index
    %c0_9 = arith.constant 0 : index
    %13 = vector.load %arg5[%c0_8, %c0_9] : memref<128x384xf32, #tpu.memory_space<vmem>>, vector<128x384xf32>
    %c0_10 = arith.constant 0 : index
    %c0_11 = arith.constant 0 : index
    %14 = vector.load %arg7[%c0_10, %c0_11] : memref<1x384xf32, #tpu.memory_space<vmem>>, vector<1x384xf32>
    %c0_12 = arith.constant 0 : index
    %c0_13 = arith.constant 0 : index
    %15 = vector.load %arg1[%c0_12, %c0_13] : memref<2x1xi32, #tpu.memory_space<vmem>>, vector<2x1xi32>
    %c0_14 = arith.constant 0 : index
    %c0_15 = arith.constant 0 : index
    %16 = vector.load %arg2[%c0_14, %c0_15] : memref<2x128xf32, #tpu.memory_space<vmem>>, vector<2x128xf32>
    %17 = vector.extract_strided_slice %12 {offsets = [0, 0], sizes = [2, 384], strides = [1, 1]} : vector<16x384xf32> to vector<2x384xf32>
    %cst_16 = arith.constant dense<0.000000e+00> : vector<2x384xf32>
    %18 = tpu.matmul %16, %13, %cst_16 {dimension_numbers = #tpu.dot_dimension_numbers<[1], [0], [0], [1], [0, 0, 1, 1], [], []>} : vector<2x128xf32>, vector<128x384xf32>, vector<2x384xf32> -> vector<2x384xf32>
    %19 = vector.broadcast %14 : vector<1x384xf32> to vector<2x384xf32>
    %20 = arith.addf %18, %19 : vector<2x384xf32>
    %21 = vector.extract_strided_slice %17 {offsets = [0, 0], sizes = [2, 128], strides = [1, 1]} : vector<2x384xf32> to vector<2x128xf32>
    %22 = vector.extract_strided_slice %20 {offsets = [0, 0], sizes = [2, 128], strides = [1, 1]} : vector<2x384xf32> to vector<2x128xf32>
    %23 = arith.addf %21, %22 : vector<2x128xf32>
    %24 = arith.negf %23 : vector<2x128xf32>
    %25 = math.exp %24 : vector<2x128xf32>
    %cst_17 = arith.constant 1.000000e+00 : f32
    %26 = vector.broadcast %cst_17 : f32 to vector<2x128xf32>
    %27 = arith.addf %26, %25 : vector<2x128xf32>
    %28 = arith.divf %26, %27 : vector<2x128xf32>
    %29 = vector.extract_strided_slice %17 {offsets = [0, 128], sizes = [2, 128], strides = [1, 1]} : vector<2x384xf32> to vector<2x128xf32>
    %30 = vector.extract_strided_slice %20 {offsets = [0, 128], sizes = [2, 128], strides = [1, 1]} : vector<2x384xf32> to vector<2x128xf32>
    %31 = arith.addf %29, %30 : vector<2x128xf32>
    %32 = arith.negf %31 : vector<2x128xf32>
    %33 = math.exp %32 : vector<2x128xf32>
    %cst_18 = arith.constant 1.000000e+00 : f32
    %34 = vector.broadcast %cst_18 : f32 to vector<2x128xf32>
    %35 = arith.addf %34, %33 : vector<2x128xf32>
    %36 = arith.divf %34, %35 : vector<2x128xf32>
    %37 = vector.extract_strided_slice %17 {offsets = [0, 256], sizes = [2, 128], strides = [1, 1]} : vector<2x384xf32> to vector<2x128xf32>
    %38 = vector.extract_strided_slice %20 {offsets = [0, 256], sizes = [2, 128], strides = [1, 1]} : vector<2x384xf32> to vector<2x128xf32>
    %39 = arith.mulf %28, %38 : vector<2x128xf32>
    %40 = arith.addf %37, %39 : vector<2x128xf32>
    %41 = math.tanh %40 : vector<2x128xf32>
    %cst_19 = arith.constant 1.000000e+00 : f32
    %42 = vector.broadcast %cst_19 : f32 to vector<2x128xf32>
    %43 = arith.subf %42, %36 : vector<2x128xf32>
    %44 = arith.mulf %43, %41 : vector<2x128xf32>
    %45 = arith.mulf %36, %16 : vector<2x128xf32>
    %46 = arith.addf %44, %45 : vector<2x128xf32>
    %c0_i32 = arith.constant 0 : i32
    %47 = vector.broadcast %c0_i32 : i32 to vector<2x1xi32>
    %48 = arith.cmpi sgt, %15, %47 : vector<2x1xi32>
    %cst_20 = arith.constant 0.000000e+00 : f32
    %49 = vector.shape_cast %48 : vector<2x1xi1> to vector<2x1xi1>
    %50 = vector.broadcast %49 : vector<2x1xi1> to vector<2x128xi1>
    %51 = vector.broadcast %cst_20 : f32 to vector<2x128xf32>
    %52 = arith.select %50, %46, %51 : vector<2x128xi1>, vector<2x128xf32>
    %53 = vector.shape_cast %48 : vector<2x1xi1> to vector<2x1xi1>
    %54 = vector.broadcast %53 : vector<2x1xi1> to vector<2x128xi1>
    %55 = arith.select %54, %46, %16 : vector<2x128xi1>, vector<2x128xf32>
    %56 = vector.extract_strided_slice %52 {offsets = [0, 0], sizes = [1, 128], strides = [1, 1]} : vector<2x128xf32> to vector<1x128xf32>
    %c0_21 = arith.constant 0 : index
    %c0_22 = arith.constant 0 : index
    %57 = vector.load %arg12[%c0_21, %c0_22] : memref<16x128xf32, #tpu.memory_space<vmem>>, vector<1x128xf32>
    tpu.vector_store %arg12[%c0_21, %c0_22], %56 {strides = array<i32>} : memref<16x128xf32, #tpu.memory_space<vmem>>, vector<1x128xf32>,
    %58 = vector.extract_strided_slice %52 {offsets = [1, 0], sizes = [1, 128], strides = [1, 1]} : vector<2x128xf32> to vector<1x128xf32>
    %c8 = arith.constant 8 : index
    %c0_23 = arith.constant 0 : index
    %59 = vector.load %arg12[%c8, %c0_23] : memref<16x128xf32, #tpu.memory_space<vmem>>, vector<1x128xf32>
    tpu.vector_store %arg12[%c8, %c0_23], %58 {strides = array<i32>} : memref<16x128xf32, #tpu.memory_space<vmem>>, vector<1x128xf32>,
    %60 = vector.extract_strided_slice %12 {offsets = [2, 0], sizes = [2, 384], strides = [1, 1]} : vector<16x384xf32> to vector<2x384xf32>
    %cst_24 = arith.constant dense<0.000000e+00> : vector<2x384xf32>
    %61 = tpu.matmul %55, %13, %cst_24 {dimension_numbers = #tpu.dot_dimension_numbers<[1], [0], [0], [1], [0, 0, 1, 1], [], []>} : vector<2x128xf32>, vector<128x384xf32>, vector<2x384xf32> -> vector<2x384xf32>
    %62 = vector.broadcast %14 : vector<1x384xf32> to vector<2x384xf32>
    %63 = arith.addf %61, %62 : vector<2x384xf32>
    %64 = vector.extract_strided_slice %60 {offsets = [0, 0], sizes = [2, 128], strides = [1, 1]} : vector<2x384xf32> to vector<2x128xf32>
    %65 = vector.extract_strided_slice %63 {offsets = [0, 0], sizes = [2, 128], strides = [1, 1]} : vector<2x384xf32> to vector<2x128xf32>
    %66 = arith.addf %64, %65 : vector<2x128xf32>
    %67 = arith.negf %66 : vector<2x128xf32>
    %68 = math.exp %67 : vector<2x128xf32>
    %cst_25 = arith.constant 1.000000e+00 : f32
    %69 = vector.broadcast %cst_25 : f32 to vector<2x128xf32>
    %70 = arith.addf %69, %68 : vector<2x128xf32>
    %71 = arith.divf %69, %70 : vector<2x128xf32>
    %72 = vector.extract_strided_slice %60 {offsets = [0, 128], sizes = [2, 128], strides = [1, 1]} : vector<2x384xf32> to vector<2x128xf32>
    %73 = vector.extract_strided_slice %63 {offsets = [0, 128], sizes = [2, 128], strides = [1, 1]} : vector<2x384xf32> to vector<2x128xf32>
    %74 = arith.addf %72, %73 : vector<2x128xf32>
    %75 = arith.negf %74 : vector<2x128xf32>
    %76 = math.exp %75 : vector<2x128xf32>
    %cst_26 = arith.constant 1.000000e+00 : f32
    %77 = vector.broadcast %cst_26 : f32 to vector<2x128xf32>
    %78 = arith.addf %77, %76 : vector<2x128xf32>
    %79 = arith.divf %77, %78 : vector<2x128xf32>
    %80 = vector.extract_strided_slice %60 {offsets = [0, 256], sizes = [2, 128], strides = [1, 1]} : vector<2x384xf32> to vector<2x128xf32>
    %81 = vector.extract_strided_slice %63 {offsets = [0, 256], sizes = [2, 128], strides = [1, 1]} : vector<2x384xf32> to vector<2x128xf32>
    %82 = arith.mulf %71, %81 : vector<2x128xf32>
    %83 = arith.addf %80, %82 : vector<2x128xf32>
    %84 = math.tanh %83 : vector<2x128xf32>
    %cst_27 = arith.constant 1.000000e+00 : f32
    %85 = vector.broadcast %cst_27 : f32 to vector<2x128xf32>
    %86 = arith.subf %85, %79 : vector<2x128xf32>
    %87 = arith.mulf %86, %84 : vector<2x128xf32>
    %88 = arith.mulf %79, %55 : vector<2x128xf32>
    %89 = arith.addf %87, %88 : vector<2x128xf32>
    %c1_i32 = arith.constant 1 : i32
    %90 = vector.broadcast %c1_i32 : i32 to vector<2x1xi32>
    %91 = arith.cmpi sgt, %15, %90 : vector<2x1xi32>
    %cst_28 = arith.constant 0.000000e+00 : f32
    %92 = vector.shape_cast %91 : vector<2x1xi1> to vector<2x1xi1>
    %93 = vector.broadcast %92 : vector<2x1xi1> to vector<2x128xi1>
    %94 = vector.broadcast %cst_28 : f32 to vector<2x128xf32>
    %95 = arith.select %93, %89, %94 : vector<2x128xi1>, vector<2x128xf32>
    %96 = vector.shape_cast %91 : vector<2x1xi1> to vector<2x1xi1>
    %97 = vector.broadcast %96 : vector<2x1xi1> to vector<2x128xi1>
    %98 = arith.select %97, %89, %55 : vector<2x128xi1>, vector<2x128xf32>
    %99 = vector.extract_strided_slice %95 {offsets = [0, 0], sizes = [1, 128], strides = [1, 1]} : vector<2x128xf32> to vector<1x128xf32>
    %c1 = arith.constant 1 : index
    %c0_29 = arith.constant 0 : index
    %100 = vector.load %arg12[%c1, %c0_29] : memref<16x128xf32, #tpu.memory_space<vmem>>, vector<1x128xf32>
    tpu.vector_store %arg12[%c1, %c0_29], %99 {strides = array<i32>} : memref<16x128xf32, #tpu.memory_space<vmem>>, vector<1x128xf32>,
    %101 = vector.extract_strided_slice %95 {offsets = [1, 0], sizes = [1, 128], strides = [1, 1]} : vector<2x128xf32> to vector<1x128xf32>
    %c9 = arith.constant 9 : index
    %c0_30 = arith.constant 0 : index
    %102 = vector.load %arg12[%c9, %c0_30] : memref<16x128xf32, #tpu.memory_space<vmem>>, vector<1x128xf32>
    tpu.vector_store %arg12[%c9, %c0_30], %101 {strides = array<i32>} : memref<16x128xf32, #tpu.memory_space<vmem>>, vector<1x128xf32>,
    %103 = vector.extract_strided_slice %12 {offsets = [4, 0], sizes = [2, 384], strides = [1, 1]} : vector<16x384xf32> to vector<2x384xf32>
    %cst_31 = arith.constant dense<0.000000e+00> : vector<2x384xf32>
    %104 = tpu.matmul %98, %13, %cst_31 {dimension_numbers = #tpu.dot_dimension_numbers<[1], [0], [0], [1], [0, 0, 1, 1], [], []>} : vector<2x128xf32>, vector<128x384xf32>, vector<2x384xf32> -> vector<2x384xf32>
    %105 = vector.broadcast %14 : vector<1x384xf32> to vector<2x384xf32>
    %106 = arith.addf %104, %105 : vector<2x384xf32>
    %107 = vector.extract_strided_slice %103 {offsets = [0, 0], sizes = [2, 128], strides = [1, 1]} : vector<2x384xf32> to vector<2x128xf32>
    %108 = vector.extract_strided_slice %106 {offsets = [0, 0], sizes = [2, 128], strides = [1, 1]} : vector<2x384xf32> to vector<2x128xf32>
    %109 = arith.addf %107, %108 : vector<2x128xf32>
    %110 = arith.negf %109 : vector<2x128xf32>
    %111 = math.exp %110 : vector<2x128xf32>
    %cst_32 = arith.constant 1.000000e+00 : f32
    %112 = vector.broadcast %cst_32 : f32 to vector<2x128xf32>
    %113 = arith.addf %112, %111 : vector<2x128xf32>
    %114 = arith.divf %112, %113 : vector<2x128xf32>
    %115 = vector.extract_strided_slice %103 {offsets = [0, 128], sizes = [2, 128], strides = [1, 1]} : vector<2x384xf32> to vector<2x128xf32>
    %116 = vector.extract_strided_slice %106 {offsets = [0, 128], sizes = [2, 128], strides = [1, 1]} : vector<2x384xf32> to vector<2x128xf32>
    %117 = arith.addf %115, %116 : vector<2x128xf32>
    %118 = arith.negf %117 : vector<2x128xf32>
    %119 = math.exp %118 : vector<2x128xf32>
    %cst_33 = arith.constant 1.000000e+00 : f32
    %120 = vector.broadcast %cst_33 : f32 to vector<2x128xf32>
    %121 = arith.addf %120, %119 : vector<2x128xf32>
    %122 = arith.divf %120, %121 : vector<2x128xf32>
    %123 = vector.extract_strided_slice %103 {offsets = [0, 256], sizes = [2, 128], strides = [1, 1]} : vector<2x384xf32> to vector<2x128xf32>
    %124 = vector.extract_strided_slice %106 {offsets = [0, 256], sizes = [2, 128], strides = [1, 1]} : vector<2x384xf32> to vector<2x128xf32>
    %125 = arith.mulf %114, %124 : vector<2x128xf32>
    %126 = arith.addf %123, %125 : vector<2x128xf32>
    %127 = math.tanh %126 : vector<2x128xf32>
    %cst_34 = arith.constant 1.000000e+00 : f32
    %128 = vector.broadcast %cst_34 : f32 to vector<2x128xf32>
    %129 = arith.subf %128, %122 : vector<2x128xf32>
    %130 = arith.mulf %129, %127 : vector<2x128xf32>
    %131 = arith.mulf %122, %98 : vector<2x128xf32>
    %132 = arith.addf %130, %131 : vector<2x128xf32>
    %c2_i32 = arith.constant 2 : i32
    %133 = vector.broadcast %c2_i32 : i32 to vector<2x1xi32>
    %134 = arith.cmpi sgt, %15, %133 : vector<2x1xi32>
    %cst_35 = arith.constant 0.000000e+00 : f32
    %135 = vector.shape_cast %134 : vector<2x1xi1> to vector<2x1xi1>
    %136 = vector.broadcast %135 : vector<2x1xi1> to vector<2x128xi1>
    %137 = vector.broadcast %cst_35 : f32 to vector<2x128xf32>
    %138 = arith.select %136, %132, %137 : vector<2x128xi1>, vector<2x128xf32>
    %139 = vector.shape_cast %134 : vector<2x1xi1> to vector<2x1xi1>
    %140 = vector.broadcast %139 : vector<2x1xi1> to vector<2x128xi1>
    %141 = arith.select %140, %132, %98 : vector<2x128xi1>, vector<2x128xf32>
    %142 = vector.extract_strided_slice %138 {offsets = [0, 0], sizes = [1, 128], strides = [1, 1]} : vector<2x128xf32> to vector<1x128xf32>
    %c2 = arith.constant 2 : index
    %c0_36 = arith.constant 0 : index
    %143 = vector.load %arg12[%c2, %c0_36] : memref<16x128xf32, #tpu.memory_space<vmem>>, vector<1x128xf32>
    tpu.vector_store %arg12[%c2, %c0_36], %142 {strides = array<i32>} : memref<16x128xf32, #tpu.memory_space<vmem>>, vector<1x128xf32>,
    %144 = vector.extract_strided_slice %138 {offsets = [1, 0], sizes = [1, 128], strides = [1, 1]} : vector<2x128xf32> to vector<1x128xf32>
    %c10 = arith.constant 10 : index
    %c0_37 = arith.constant 0 : index
    %145 = vector.load %arg12[%c10, %c0_37] : memref<16x128xf32, #tpu.memory_space<vmem>>, vector<1x128xf32>
    tpu.vector_store %arg12[%c10, %c0_37], %144 {strides = array<i32>} : memref<16x128xf32, #tpu.memory_space<vmem>>, vector<1x128xf32>,
    %146 = vector.extract_strided_slice %12 {offsets = [6, 0], sizes = [2, 384], strides = [1, 1]} : vector<16x384xf32> to vector<2x384xf32>
    %cst_38 = arith.constant dense<0.000000e+00> : vector<2x384xf32>
    %147 = tpu.matmul %141, %13, %cst_38 {dimension_numbers = #tpu.dot_dimension_numbers<[1], [0], [0], [1], [0, 0, 1, 1], [], []>} : vector<2x128xf32>, vector<128x384xf32>, vector<2x384xf32> -> vector<2x384xf32>
    %148 = vector.broadcast %14 : vector<1x384xf32> to vector<2x384xf32>
    %149 = arith.addf %147, %148 : vector<2x384xf32>
    %150 = vector.extract_strided_slice %146 {offsets = [0, 0], sizes = [2, 128], strides = [1, 1]} : vector<2x384xf32> to vector<2x128xf32>
    %151 = vector.extract_strided_slice %149 {offsets = [0, 0], sizes = [2, 128], strides = [1, 1]} : vector<2x384xf32> to vector<2x128xf32>
    %152 = arith.addf %150, %151 : vector<2x128xf32>
    %153 = arith.negf %152 : vector<2x128xf32>
    %154 = math.exp %153 : vector<2x128xf32>
    %cst_39 = arith.constant 1.000000e+00 : f32
    %155 = vector.broadcast %cst_39 : f32 to vector<2x128xf32>
    %156 = arith.addf %155, %154 : vector<2x128xf32>
    %157 = arith.divf %155, %156 : vector<2x128xf32>
    %158 = vector.extract_strided_slice %146 {offsets = [0, 128], sizes = [2, 128], strides = [1, 1]} : vector<2x384xf32> to vector<2x128xf32>
    %159 = vector.extract_strided_slice %149 {offsets = [0, 128], sizes = [2, 128], strides = [1, 1]} : vector<2x384xf32> to vector<2x128xf32>
    %160 = arith.addf %158, %159 : vector<2x128xf32>
    %161 = arith.negf %160 : vector<2x128xf32>
    %162 = math.exp %161 : vector<2x128xf32>
    %cst_40 = arith.constant 1.000000e+00 : f32
    %163 = vector.broadcast %cst_40 : f32 to vector<2x128xf32>
    %164 = arith.addf %163, %162 : vector<2x128xf32>
    %165 = arith.divf %163, %164 : vector<2x128xf32>
    %166 = vector.extract_strided_slice %146 {offsets = [0, 256], sizes = [2, 128], strides = [1, 1]} : vector<2x384xf32> to vector<2x128xf32>
    %167 = vector.extract_strided_slice %149 {offsets = [0, 256], sizes = [2, 128], strides = [1, 1]} : vector<2x384xf32> to vector<2x128xf32>
    %168 = arith.mulf %157, %167 : vector<2x128xf32>
    %169 = arith.addf %166, %168 : vector<2x128xf32>
    %170 = math.tanh %169 : vector<2x128xf32>
    %cst_41 = arith.constant 1.000000e+00 : f32
    %171 = vector.broadcast %cst_41 : f32 to vector<2x128xf32>
    %172 = arith.subf %171, %165 : vector<2x128xf32>
    %173 = arith.mulf %172, %170 : vector<2x128xf32>
    %174 = arith.mulf %165, %141 : vector<2x128xf32>
    %175 = arith.addf %173, %174 : vector<2x128xf32>
    %c3_i32 = arith.constant 3 : i32
    %176 = vector.broadcast %c3_i32 : i32 to vector<2x1xi32>
    %177 = arith.cmpi sgt, %15, %176 : vector<2x1xi32>
    %cst_42 = arith.constant 0.000000e+00 : f32
    %178 = vector.shape_cast %177 : vector<2x1xi1> to vector<2x1xi1>
    %179 = vector.broadcast %178 : vector<2x1xi1> to vector<2x128xi1>
    %180 = vector.broadcast %cst_42 : f32 to vector<2x128xf32>
    %181 = arith.select %179, %175, %180 : vector<2x128xi1>, vector<2x128xf32>
    %182 = vector.shape_cast %177 : vector<2x1xi1> to vector<2x1xi1>
    %183 = vector.broadcast %182 : vector<2x1xi1> to vector<2x128xi1>
    %184 = arith.select %183, %175, %141 : vector<2x128xi1>, vector<2x128xf32>
    %185 = vector.extract_strided_slice %181 {offsets = [0, 0], sizes = [1, 128], strides = [1, 1]} : vector<2x128xf32> to vector<1x128xf32>
    %c3 = arith.constant 3 : index
    %c0_43 = arith.constant 0 : index
    %186 = vector.load %arg12[%c3, %c0_43] : memref<16x128xf32, #tpu.memory_space<vmem>>, vector<1x128xf32>
    tpu.vector_store %arg12[%c3, %c0_43], %185 {strides = array<i32>} : memref<16x128xf32, #tpu.memory_space<vmem>>, vector<1x128xf32>,
    %187 = vector.extract_strided_slice %181 {offsets = [1, 0], sizes = [1, 128], strides = [1, 1]} : vector<2x128xf32> to vector<1x128xf32>
    %c11 = arith.constant 11 : index
    %c0_44 = arith.constant 0 : index
    %188 = vector.load %arg12[%c11, %c0_44] : memref<16x128xf32, #tpu.memory_space<vmem>>, vector<1x128xf32>
    tpu.vector_store %arg12[%c11, %c0_44], %187 {strides = array<i32>} : memref<16x128xf32, #tpu.memory_space<vmem>>, vector<1x128xf32>,
    %189 = vector.extract_strided_slice %12 {offsets = [8, 0], sizes = [2, 384], strides = [1, 1]} : vector<16x384xf32> to vector<2x384xf32>
    %cst_45 = arith.constant dense<0.000000e+00> : vector<2x384xf32>
    %190 = tpu.matmul %184, %13, %cst_45 {dimension_numbers = #tpu.dot_dimension_numbers<[1], [0], [0], [1], [0, 0, 1, 1], [], []>} : vector<2x128xf32>, vector<128x384xf32>, vector<2x384xf32> -> vector<2x384xf32>
    %191 = vector.broadcast %14 : vector<1x384xf32> to vector<2x384xf32>
    %192 = arith.addf %190, %191 : vector<2x384xf32>
    %193 = vector.extract_strided_slice %189 {offsets = [0, 0], sizes = [2, 128], strides = [1, 1]} : vector<2x384xf32> to vector<2x128xf32>
    %194 = vector.extract_strided_slice %192 {offsets = [0, 0], sizes = [2, 128], strides = [1, 1]} : vector<2x384xf32> to vector<2x128xf32>
    %195 = arith.addf %193, %194 : vector<2x128xf32>
    %196 = arith.negf %195 : vector<2x128xf32>
    %197 = math.exp %196 : vector<2x128xf32>
    %cst_46 = arith.constant 1.000000e+00 : f32
    %198 = vector.broadcast %cst_46 : f32 to vector<2x128xf32>
    %199 = arith.addf %198, %197 : vector<2x128xf32>
    %200 = arith.divf %198, %199 : vector<2x128xf32>
    %201 = vector.extract_strided_slice %189 {offsets = [0, 128], sizes = [2, 128], strides = [1, 1]} : vector<2x384xf32> to vector<2x128xf32>
    %202 = vector.extract_strided_slice %192 {offsets = [0, 128], sizes = [2, 128], strides = [1, 1]} : vector<2x384xf32> to vector<2x128xf32>
    %203 = arith.addf %201, %202 : vector<2x128xf32>
    %204 = arith.negf %203 : vector<2x128xf32>
    %205 = math.exp %204 : vector<2x128xf32>
    %cst_47 = arith.constant 1.000000e+00 : f32
    %206 = vector.broadcast %cst_47 : f32 to vector<2x128xf32>
    %207 = arith.addf %206, %205 : vector<2x128xf32>
    %208 = arith.divf %206, %207 : vector<2x128xf32>
    %209 = vector.extract_strided_slice %189 {offsets = [0, 256], sizes = [2, 128], strides = [1, 1]} : vector<2x384xf32> to vector<2x128xf32>
    %210 = vector.extract_strided_slice %192 {offsets = [0, 256], sizes = [2, 128], strides = [1, 1]} : vector<2x384xf32> to vector<2x128xf32>
    %211 = arith.mulf %200, %210 : vector<2x128xf32>
    %212 = arith.addf %209, %211 : vector<2x128xf32>
    %213 = math.tanh %212 : vector<2x128xf32>
    %cst_48 = arith.constant 1.000000e+00 : f32
    %214 = vector.broadcast %cst_48 : f32 to vector<2x128xf32>
    %215 = arith.subf %214, %208 : vector<2x128xf32>
    %216 = arith.mulf %215, %213 : vector<2x128xf32>
    %217 = arith.mulf %208, %184 : vector<2x128xf32>
    %218 = arith.addf %216, %217 : vector<2x128xf32>
    %c4_i32 = arith.constant 4 : i32
    %219 = vector.broadcast %c4_i32 : i32 to vector<2x1xi32>
    %220 = arith.cmpi sgt, %15, %219 : vector<2x1xi32>
    %cst_49 = arith.constant 0.000000e+00 : f32
    %221 = vector.shape_cast %220 : vector<2x1xi1> to vector<2x1xi1>
    %222 = vector.broadcast %221 : vector<2x1xi1> to vector<2x128xi1>
    %223 = vector.broadcast %cst_49 : f32 to vector<2x128xf32>
    %224 = arith.select %222, %218, %223 : vector<2x128xi1>, vector<2x128xf32>
    %225 = vector.shape_cast %220 : vector<2x1xi1> to vector<2x1xi1>
    %226 = vector.broadcast %225 : vector<2x1xi1> to vector<2x128xi1>
    %227 = arith.select %226, %218, %184 : vector<2x128xi1>, vector<2x128xf32>
    %228 = vector.extract_strided_slice %224 {offsets = [0, 0], sizes = [1, 128], strides = [1, 1]} : vector<2x128xf32> to vector<1x128xf32>
    %c4 = arith.constant 4 : index
    %c0_50 = arith.constant 0 : index
    %229 = vector.load %arg12[%c4, %c0_50] : memref<16x128xf32, #tpu.memory_space<vmem>>, vector<1x128xf32>
    tpu.vector_store %arg12[%c4, %c0_50], %228 {strides = array<i32>} : memref<16x128xf32, #tpu.memory_space<vmem>>, vector<1x128xf32>,
    %230 = vector.extract_strided_slice %224 {offsets = [1, 0], sizes = [1, 128], strides = [1, 1]} : vector<2x128xf32> to vector<1x128xf32>
    %c12 = arith.constant 12 : index
    %c0_51 = arith.constant 0 : index
    %231 = vector.load %arg12[%c12, %c0_51] : memref<16x128xf32, #tpu.memory_space<vmem>>, vector<1x128xf32>
    tpu.vector_store %arg12[%c12, %c0_51], %230 {strides = array<i32>} : memref<16x128xf32, #tpu.memory_space<vmem>>, vector<1x128xf32>,
    %232 = vector.extract_strided_slice %12 {offsets = [10, 0], sizes = [2, 384], strides = [1, 1]} : vector<16x384xf32> to vector<2x384xf32>
    %cst_52 = arith.constant dense<0.000000e+00> : vector<2x384xf32>
    %233 = tpu.matmul %227, %13, %cst_52 {dimension_numbers = #tpu.dot_dimension_numbers<[1], [0], [0], [1], [0, 0, 1, 1], [], []>} : vector<2x128xf32>, vector<128x384xf32>, vector<2x384xf32> -> vector<2x384xf32>
    %234 = vector.broadcast %14 : vector<1x384xf32> to vector<2x384xf32>
    %235 = arith.addf %233, %234 : vector<2x384xf32>
    %236 = vector.extract_strided_slice %232 {offsets = [0, 0], sizes = [2, 128], strides = [1, 1]} : vector<2x384xf32> to vector<2x128xf32>
    %237 = vector.extract_strided_slice %235 {offsets = [0, 0], sizes = [2, 128], strides = [1, 1]} : vector<2x384xf32> to vector<2x128xf32>
    %238 = arith.addf %236, %237 : vector<2x128xf32>
    %239 = arith.negf %238 : vector<2x128xf32>
    %240 = math.exp %239 : vector<2x128xf32>
    %cst_53 = arith.constant 1.000000e+00 : f32
    %241 = vector.broadcast %cst_53 : f32 to vector<2x128xf32>
    %242 = arith.addf %241, %240 : vector<2x128xf32>
    %243 = arith.divf %241, %242 : vector<2x128xf32>
    %244 = vector.extract_strided_slice %232 {offsets = [0, 128], sizes = [2, 128], strides = [1, 1]} : vector<2x384xf32> to vector<2x128xf32>
    %245 = vector.extract_strided_slice %235 {offsets = [0, 128], sizes = [2, 128], strides = [1, 1]} : vector<2x384xf32> to vector<2x128xf32>
    %246 = arith.addf %244, %245 : vector<2x128xf32>
    %247 = arith.negf %246 : vector<2x128xf32>
    %248 = math.exp %247 : vector<2x128xf32>
    %cst_54 = arith.constant 1.000000e+00 : f32
    %249 = vector.broadcast %cst_54 : f32 to vector<2x128xf32>
    %250 = arith.addf %249, %248 : vector<2x128xf32>
    %251 = arith.divf %249, %250 : vector<2x128xf32>
    %252 = vector.extract_strided_slice %232 {offsets = [0, 256], sizes = [2, 128], strides = [1, 1]} : vector<2x384xf32> to vector<2x128xf32>
    %253 = vector.extract_strided_slice %235 {offsets = [0, 256], sizes = [2, 128], strides = [1, 1]} : vector<2x384xf32> to vector<2x128xf32>
    %254 = arith.mulf %243, %253 : vector<2x128xf32>
    %255 = arith.addf %252, %254 : vector<2x128xf32>
    %256 = math.tanh %255 : vector<2x128xf32>
    %cst_55 = arith.constant 1.000000e+00 : f32
    %257 = vector.broadcast %cst_55 : f32 to vector<2x128xf32>
    %258 = arith.subf %257, %251 : vector<2x128xf32>
    %259 = arith.mulf %258, %256 : vector<2x128xf32>
    %260 = arith.mulf %251, %227 : vector<2x128xf32>
    %261 = arith.addf %259, %260 : vector<2x128xf32>
    %c5_i32 = arith.constant 5 : i32
    %262 = vector.broadcast %c5_i32 : i32 to vector<2x1xi32>
    %263 = arith.cmpi sgt, %15, %262 : vector<2x1xi32>
    %cst_56 = arith.constant 0.000000e+00 : f32
    %264 = vector.shape_cast %263 : vector<2x1xi1> to vector<2x1xi1>
    %265 = vector.broadcast %264 : vector<2x1xi1> to vector<2x128xi1>
    %266 = vector.broadcast %cst_56 : f32 to vector<2x128xf32>
    %267 = arith.select %265, %261, %266 : vector<2x128xi1>, vector<2x128xf32>
    %268 = vector.shape_cast %263 : vector<2x1xi1> to vector<2x1xi1>
    %269 = vector.broadcast %268 : vector<2x1xi1> to vector<2x128xi1>
    %270 = arith.select %269, %261, %227 : vector<2x128xi1>, vector<2x128xf32>
    %271 = vector.extract_strided_slice %267 {offsets = [0, 0], sizes = [1, 128], strides = [1, 1]} : vector<2x128xf32> to vector<1x128xf32>
    %c5 = arith.constant 5 : index
    %c0_57 = arith.constant 0 : index
    %272 = vector.load %arg12[%c5, %c0_57] : memref<16x128xf32, #tpu.memory_space<vmem>>, vector<1x128xf32>
    tpu.vector_store %arg12[%c5, %c0_57], %271 {strides = array<i32>} : memref<16x128xf32, #tpu.memory_space<vmem>>, vector<1x128xf32>,
    %273 = vector.extract_strided_slice %267 {offsets = [1, 0], sizes = [1, 128], strides = [1, 1]} : vector<2x128xf32> to vector<1x128xf32>
    %c13 = arith.constant 13 : index
    %c0_58 = arith.constant 0 : index
    %274 = vector.load %arg12[%c13, %c0_58] : memref<16x128xf32, #tpu.memory_space<vmem>>, vector<1x128xf32>
    tpu.vector_store %arg12[%c13, %c0_58], %273 {strides = array<i32>} : memref<16x128xf32, #tpu.memory_space<vmem>>, vector<1x128xf32>,
    %275 = vector.extract_strided_slice %12 {offsets = [12, 0], sizes = [2, 384], strides = [1, 1]} : vector<16x384xf32> to vector<2x384xf32>
    %cst_59 = arith.constant dense<0.000000e+00> : vector<2x384xf32>
    %276 = tpu.matmul %270, %13, %cst_59 {dimension_numbers = #tpu.dot_dimension_numbers<[1], [0], [0], [1], [0, 0, 1, 1], [], []>} : vector<2x128xf32>, vector<128x384xf32>, vector<2x384xf32> -> vector<2x384xf32>
    %277 = vector.broadcast %14 : vector<1x384xf32> to vector<2x384xf32>
    %278 = arith.addf %276, %277 : vector<2x384xf32>
    %279 = vector.extract_strided_slice %275 {offsets = [0, 0], sizes = [2, 128], strides = [1, 1]} : vector<2x384xf32> to vector<2x128xf32>
    %280 = vector.extract_strided_slice %278 {offsets = [0, 0], sizes = [2, 128], strides = [1, 1]} : vector<2x384xf32> to vector<2x128xf32>
    %281 = arith.addf %279, %280 : vector<2x128xf32>
    %282 = arith.negf %281 : vector<2x128xf32>
    %283 = math.exp %282 : vector<2x128xf32>
    %cst_60 = arith.constant 1.000000e+00 : f32
    %284 = vector.broadcast %cst_60 : f32 to vector<2x128xf32>
    %285 = arith.addf %284, %283 : vector<2x128xf32>
    %286 = arith.divf %284, %285 : vector<2x128xf32>
    %287 = vector.extract_strided_slice %275 {offsets = [0, 128], sizes = [2, 128], strides = [1, 1]} : vector<2x384xf32> to vector<2x128xf32>
    %288 = vector.extract_strided_slice %278 {offsets = [0, 128], sizes = [2, 128], strides = [1, 1]} : vector<2x384xf32> to vector<2x128xf32>
    %289 = arith.addf %287, %288 : vector<2x128xf32>
    %290 = arith.negf %289 : vector<2x128xf32>
    %291 = math.exp %290 : vector<2x128xf32>
    %cst_61 = arith.constant 1.000000e+00 : f32
    %292 = vector.broadcast %cst_61 : f32 to vector<2x128xf32>
    %293 = arith.addf %292, %291 : vector<2x128xf32>
    %294 = arith.divf %292, %293 : vector<2x128xf32>
    %295 = vector.extract_strided_slice %275 {offsets = [0, 256], sizes = [2, 128], strides = [1, 1]} : vector<2x384xf32> to vector<2x128xf32>
    %296 = vector.extract_strided_slice %278 {offsets = [0, 256], sizes = [2, 128], strides = [1, 1]} : vector<2x384xf32> to vector<2x128xf32>
    %297 = arith.mulf %286, %296 : vector<2x128xf32>
    %298 = arith.addf %295, %297 : vector<2x128xf32>
    %299 = math.tanh %298 : vector<2x128xf32>
    %cst_62 = arith.constant 1.000000e+00 : f32
    %300 = vector.broadcast %cst_62 : f32 to vector<2x128xf32>
    %301 = arith.subf %300, %294 : vector<2x128xf32>
    %302 = arith.mulf %301, %299 : vector<2x128xf32>
    %303 = arith.mulf %294, %270 : vector<2x128xf32>
    %304 = arith.addf %302, %303 : vector<2x128xf32>
    %c6_i32 = arith.constant 6 : i32
    %305 = vector.broadcast %c6_i32 : i32 to vector<2x1xi32>
    %306 = arith.cmpi sgt, %15, %305 : vector<2x1xi32>
    %cst_63 = arith.constant 0.000000e+00 : f32
    %307 = vector.shape_cast %306 : vector<2x1xi1> to vector<2x1xi1>
    %308 = vector.broadcast %307 : vector<2x1xi1> to vector<2x128xi1>
    %309 = vector.broadcast %cst_63 : f32 to vector<2x128xf32>
    %310 = arith.select %308, %304, %309 : vector<2x128xi1>, vector<2x128xf32>
    %311 = vector.shape_cast %306 : vector<2x1xi1> to vector<2x1xi1>
    %312 = vector.broadcast %311 : vector<2x1xi1> to vector<2x128xi1>
    %313 = arith.select %312, %304, %270 : vector<2x128xi1>, vector<2x128xf32>
    %314 = vector.extract_strided_slice %310 {offsets = [0, 0], sizes = [1, 128], strides = [1, 1]} : vector<2x128xf32> to vector<1x128xf32>
    %c6 = arith.constant 6 : index
    %c0_64 = arith.constant 0 : index
    %315 = vector.load %arg12[%c6, %c0_64] : memref<16x128xf32, #tpu.memory_space<vmem>>, vector<1x128xf32>
    tpu.vector_store %arg12[%c6, %c0_64], %314 {strides = array<i32>} : memref<16x128xf32, #tpu.memory_space<vmem>>, vector<1x128xf32>,
    %316 = vector.extract_strided_slice %310 {offsets = [1, 0], sizes = [1, 128], strides = [1, 1]} : vector<2x128xf32> to vector<1x128xf32>
    %c14 = arith.constant 14 : index
    %c0_65 = arith.constant 0 : index
    %317 = vector.load %arg12[%c14, %c0_65] : memref<16x128xf32, #tpu.memory_space<vmem>>, vector<1x128xf32>
    tpu.vector_store %arg12[%c14, %c0_65], %316 {strides = array<i32>} : memref<16x128xf32, #tpu.memory_space<vmem>>, vector<1x128xf32>,
    %318 = vector.extract_strided_slice %12 {offsets = [14, 0], sizes = [2, 384], strides = [1, 1]} : vector<16x384xf32> to vector<2x384xf32>
    %cst_66 = arith.constant dense<0.000000e+00> : vector<2x384xf32>
    %319 = tpu.matmul %313, %13, %cst_66 {dimension_numbers = #tpu.dot_dimension_numbers<[1], [0], [0], [1], [0, 0, 1, 1], [], []>} : vector<2x128xf32>, vector<128x384xf32>, vector<2x384xf32> -> vector<2x384xf32>
    %320 = vector.broadcast %14 : vector<1x384xf32> to vector<2x384xf32>
    %321 = arith.addf %319, %320 : vector<2x384xf32>
    %322 = vector.extract_strided_slice %318 {offsets = [0, 0], sizes = [2, 128], strides = [1, 1]} : vector<2x384xf32> to vector<2x128xf32>
    %323 = vector.extract_strided_slice %321 {offsets = [0, 0], sizes = [2, 128], strides = [1, 1]} : vector<2x384xf32> to vector<2x128xf32>
    %324 = arith.addf %322, %323 : vector<2x128xf32>
    %325 = arith.negf %324 : vector<2x128xf32>
    %326 = math.exp %325 : vector<2x128xf32>
    %cst_67 = arith.constant 1.000000e+00 : f32
    %327 = vector.broadcast %cst_67 : f32 to vector<2x128xf32>
    %328 = arith.addf %327, %326 : vector<2x128xf32>
    %329 = arith.divf %327, %328 : vector<2x128xf32>
    %330 = vector.extract_strided_slice %318 {offsets = [0, 128], sizes = [2, 128], strides = [1, 1]} : vector<2x384xf32> to vector<2x128xf32>
    %331 = vector.extract_strided_slice %321 {offsets = [0, 128], sizes = [2, 128], strides = [1, 1]} : vector<2x384xf32> to vector<2x128xf32>
    %332 = arith.addf %330, %331 : vector<2x128xf32>
    %333 = arith.negf %332 : vector<2x128xf32>
    %334 = math.exp %333 : vector<2x128xf32>
    %cst_68 = arith.constant 1.000000e+00 : f32
    %335 = vector.broadcast %cst_68 : f32 to vector<2x128xf32>
    %336 = arith.addf %335, %334 : vector<2x128xf32>
    %337 = arith.divf %335, %336 : vector<2x128xf32>
    %338 = vector.extract_strided_slice %318 {offsets = [0, 256], sizes = [2, 128], strides = [1, 1]} : vector<2x384xf32> to vector<2x128xf32>
    %339 = vector.extract_strided_slice %321 {offsets = [0, 256], sizes = [2, 128], strides = [1, 1]} : vector<2x384xf32> to vector<2x128xf32>
    %340 = arith.mulf %329, %339 : vector<2x128xf32>
    %341 = arith.addf %338, %340 : vector<2x128xf32>
    %342 = math.tanh %341 : vector<2x128xf32>
    %cst_69 = arith.constant 1.000000e+00 : f32
    %343 = vector.broadcast %cst_69 : f32 to vector<2x128xf32>
    %344 = arith.subf %343, %337 : vector<2x128xf32>
    %345 = arith.mulf %344, %342 : vector<2x128xf32>
    %346 = arith.mulf %337, %313 : vector<2x128xf32>
    %347 = arith.addf %345, %346 : vector<2x128xf32>
    %c7_i32 = arith.constant 7 : i32
    %348 = vector.broadcast %c7_i32 : i32 to vector<2x1xi32>
    %349 = arith.cmpi sgt, %15, %348 : vector<2x1xi32>
    %cst_70 = arith.constant 0.000000e+00 : f32
    %350 = vector.shape_cast %349 : vector<2x1xi1> to vector<2x1xi1>
    %351 = vector.broadcast %350 : vector<2x1xi1> to vector<2x128xi1>
    %352 = vector.broadcast %cst_70 : f32 to vector<2x128xf32>
    %353 = arith.select %351, %347, %352 : vector<2x128xi1>, vector<2x128xf32>
    %354 = vector.shape_cast %349 : vector<2x1xi1> to vector<2x1xi1>
    %355 = vector.broadcast %354 : vector<2x1xi1> to vector<2x128xi1>
    %356 = arith.select %355, %347, %313 : vector<2x128xi1>, vector<2x128xf32>
    %357 = vector.extract_strided_slice %353 {offsets = [0, 0], sizes = [1, 128], strides = [1, 1]} : vector<2x128xf32> to vector<1x128xf32>
    %c7 = arith.constant 7 : index
    %c0_71 = arith.constant 0 : index
    %358 = vector.load %arg12[%c7, %c0_71] : memref<16x128xf32, #tpu.memory_space<vmem>>, vector<1x128xf32>
    tpu.vector_store %arg12[%c7, %c0_71], %357 {strides = array<i32>} : memref<16x128xf32, #tpu.memory_space<vmem>>, vector<1x128xf32>,
    %359 = vector.extract_strided_slice %353 {offsets = [1, 0], sizes = [1, 128], strides = [1, 1]} : vector<2x128xf32> to vector<1x128xf32>
    %c15 = arith.constant 15 : index
    %c0_72 = arith.constant 0 : index
    %360 = vector.load %arg12[%c15, %c0_72] : memref<16x128xf32, #tpu.memory_space<vmem>>, vector<1x128xf32>
    tpu.vector_store %arg12[%c15, %c0_72], %359 {strides = array<i32>} : memref<16x128xf32, #tpu.memory_space<vmem>>, vector<1x128xf32>,
    %c0_73 = arith.constant 0 : index
    %c0_74 = arith.constant 0 : index
    %361 = vector.load %arg11[%c0_73, %c0_74] : memref<2x128xf32, #tpu.memory_space<vmem>>, vector<2x128xf32>
    tpu.vector_store %arg11[%c0_73, %c0_74], %356 {strides = array<i32>} : memref<2x128xf32, #tpu.memory_space<vmem>>, vector<2x128xf32>,
    %c0_75 = arith.constant 0 : index
    %c0_76 = arith.constant 0 : index
    %362 = vector.load %arg12[%c0_75, %c0_76] : memref<16x128xf32, #tpu.memory_space<vmem>>, vector<16x128xf32>
    %c0_77 = arith.constant 0 : index
    %c0_78 = arith.constant 0 : index
    %363 = vector.load %arg8[%c0_77, %c0_78] : memref<128x128xf32, #tpu.memory_space<vmem>>, vector<128x128xf32>
    %cst_79 = arith.constant dense<0.000000e+00> : vector<16x128xf32>
    %364 = tpu.matmul %362, %363, %cst_79 {dimension_numbers = #tpu.dot_dimension_numbers<[1], [0], [0], [1], [0, 0, 1, 1], [], []>} : vector<16x128xf32>, vector<128x128xf32>, vector<16x128xf32> -> vector<16x128xf32>
    %c0_80 = arith.constant 0 : index
    %c0_81 = arith.constant 0 : index
    %365 = vector.load %arg9[%c0_80, %c0_81] : memref<1x128xf32, #tpu.memory_space<vmem>>, vector<1x128xf32>
    %366 = vector.broadcast %365 : vector<1x128xf32> to vector<16x128xf32>
    %367 = arith.addf %364, %366 : vector<16x128xf32>
    %cst_82 = arith.constant dense<0xFF800000> : vector<16xf32>
    %368 = vector.multi_reduction <maximumf>, %367, %cst_82 [1] : vector<16x128xf32> to vector<16xf32>
    %369 = vector.shape_cast %368 : vector<16xf32> to vector<16x1xf32>
    %370 = vector.broadcast %369 : vector<16x1xf32> to vector<16x128xf32>
    %371 = arith.subf %367, %370 : vector<16x128xf32>
    %372 = math.exp %371 : vector<16x128xf32>
    %cst_83 = arith.constant dense<0.000000e+00> : vector<16xf32>
    %373 = vector.multi_reduction <add>, %372, %cst_83 [1] : vector<16x128xf32> to vector<16xf32>
    %374 = vector.shape_cast %373 : vector<16xf32> to vector<16x1xf32>
    %375 = math.log %374 : vector<16x1xf32>
    %376 = vector.broadcast %375 : vector<16x1xf32> to vector<16x128xf32>
    %377 = arith.subf %371, %376 : vector<16x128xf32>
    %c0_84 = arith.constant 0 : index
    %c0_85 = arith.constant 0 : index
    %378 = vector.load %arg10[%c0_84, %c0_85] : memref<16x128xf32, #tpu.memory_space<vmem>>, vector<16x128xf32>
    tpu.vector_store %arg10[%c0_84, %c0_85], %377 {strides = array<i32>} : memref<16x128xf32, #tpu.memory_space<vmem>>, vector<16x128xf32>,
    return
  }
}

</mosaic_0001>

<llo_original>
// kernel: tpu_custom_call.1
$region0: #{tpu_custom_call.1}
  #allocation0 [shape = 'u32[]', space=smem, size = 0x4, offset = 0x4, fixed_abs, tag = 'smem constant byte address 0x4 - core index']
  #allocation1 [shape = 'u32[72,128]{1,0:T(1,128)}', space=vmem, size = 0x9000, scoped, tag = 'internal scratch']
  #allocation2 [shape = 'f32[16,128]{1,0:T(8,128)}', space=vmem, size = 0x2000, scoped, tag = 'scratch operand']
  %s0 = inlined_call_operand.vmem [shape: s32[16,1], index: 0, kind: input, shape index: {}]
  %s1 = inlined_call_operand.vmem [shape: s32[2,1], index: 1, kind: input, shape index: {}]
  %s2 = inlined_call_operand.vmem [shape: f32[2,128], index: 2, kind: input, shape index: {}]
  %s3 = inlined_call_operand.hbm [shape: f32[128,128], index: 3, kind: input, shape index: {}]
  %s4 = inlined_call_operand.hbm [shape: f32[128,384], index: 4, kind: input, shape index: {}]
  %s5 = inlined_call_operand.hbm [shape: f32[128,384], index: 5, kind: input, shape index: {}]
  %s6 = inlined_call_operand.vmem [shape: f32[1,384], index: 6, kind: input, shape index: {}]
  %s7 = inlined_call_operand.vmem [shape: f32[1,384], index: 7, kind: input, shape index: {}]
  %s8 = inlined_call_operand.hbm [shape: f32[128,128], index: 8, kind: input, shape index: {}]
  %s9 = inlined_call_operand.vmem [shape: f32[1,128], index: 9, kind: input, shape index: {}]
  %s10 = inlined_call_operand.hbm [shape: f32[16,128], index: 10, kind: output, shape index: {0}]
  %s11 = inlined_call_operand.hbm [shape: f32[2,128], index: 11, kind: output, shape index: {1}]
  %12 = xla_tuple %s10, %s11
  %s13 = sld [smem:[#allocation0]]
  $region74: #{tpu_custom_call.1} parent=0
    _
  %s15 = ssub.s32 1, %s13
  %s16 = scalar_select 0, %s15, %s13
  $region1: #{tpu_custom_call.1} parent=0
    #allocation3 [shape = 'u8[65536]{0}', space=vmem, size = 0x10000, scoped, tag = 'input window, operand 3, single buffered']
    #allocation4 [shape = 's32[1]{0}', space=sflag, size = 0x4, scoped, tag = 'scoped memory for tpu_custom_call.1']
    #allocation5 [shape = 's32[1]{0}', space=sflag, size = 0x4, scoped, tag = 'scoped memory for tpu_custom_call.1']
    #allocation6 [shape = 'u8[196608]{0}', space=vmem, size = 0x30000, scoped, tag = 'input window, operand 4, single buffered']
    #allocation7 [shape = 's32[1]{0}', space=sflag, size = 0x4, scoped, tag = 'scoped memory for tpu_custom_call.1']
    #allocation8 [shape = 'u8[196608]{0}', space=vmem, size = 0x30000, scoped, tag = 'input window, operand 5, single buffered']
    #allocation9 [shape = 'u8[65536]{0}', space=vmem, size = 0x10000, scoped, tag = 'input window, operand 8, single buffered']
    #allocation10 [shape = 's32[1]{0}', space=sflag, size = 0x4, scoped, tag = 'scoped memory for tpu_custom_call.1']
    #allocation11 [shape = 'u8[8192]{0}', space=vmem, size = 0x2000, scoped, tag = 'output window, operand 0, single buffered']
    #allocation12 [shape = 'u8[1024]{0}', space=vmem, size = 0x400, scoped, tag = 'output window, operand 1, single buffered']
    #allocation13 [shape = 's32[1]{0}', space=sflag, size = 0x4, scoped, tag = 'scoped memory for tpu_custom_call.1']
    %17 = vsyncpa [#allocation4], 0
    %18 = vsyncpa [#allocation7], 0
    %19 = vsyncpa [#allocation10], 0
    %20 = vsyncpa [#allocation5], 0
    %21 = vsyncpa [#allocation13], 0
    // Predicated region
    $region2: #{tpu_custom_call.1} parent=1 // pred_check
      _
    $region3: #{tpu_custom_call.1} parent=1 // pred_check_branch
      %23 = sbr.rel (0) target = $region5
    $region4: #{tpu_custom_call.1} parent=1 // pred_region
      _
    $region5: #{tpu_custom_call.1} parent=1 // pred_fallthru
      _
    // Predicated region
    $region6: #{tpu_custom_call.1} parent=1 // pred_check
      _
    $region7: #{tpu_custom_call.1} parent=1 // pred_check_branch
      %25 = sbr.rel (0) target = $region9
    $region8: #{tpu_custom_call.1} parent=1 // pred_region
      _
    $region9: #{tpu_custom_call.1} parent=1 // pred_fallthru
      _
    // Predicated region
    $region10: #{tpu_custom_call.1} parent=1 // pred_check
      _
    $region11: #{tpu_custom_call.1} parent=1 // pred_check_branch
      %27 = sbr.rel (0) target = $region13
    $region12: #{tpu_custom_call.1} parent=1 // pred_region
      _
    $region13: #{tpu_custom_call.1} parent=1 // pred_fallthru
      _
    // Predicated region
    $region14: #{tpu_custom_call.1} parent=1 // pred_check
      _
    $region15: #{tpu_custom_call.1} parent=1 // pred_check_branch
      %29 = sbr.rel (0) target = $region17
    $region16: #{tpu_custom_call.1} parent=1 // pred_region
      %31 = vsyncadd [#allocation4], 0
      %s32 = sshll.u32 %s3, 4
      %s33 = int_to_ptr.hbm [resolvable:$true] %s32
      %s34 = sshll.u32 [#allocation3], 4
      %s35 = int_to_ptr.vmem [resolvable:$true] %s34
      %40 = dma.hbm_to_vmem [thread:$0]  %s33, 2048, %s35, [#allocation4], 128, 128, 8
    $region17: #{tpu_custom_call.1} parent=1 // pred_fallthru
      _
    // Predicated region
    $region18: #{tpu_custom_call.1} parent=1 // pred_check
      _
    $region19: #{tpu_custom_call.1} parent=1 // pred_check_branch
      %42 = sbr.rel (0) target = $region21
    $region20: #{tpu_custom_call.1} parent=1 // pred_region
      %44 = vsyncadd [#allocation7], 0
      %s45 = sshll.u32 %s4, 4
      %s46 = int_to_ptr.hbm [resolvable:$true] %s45
      %s47 = sshll.u32 [#allocation6], 4
      %s48 = int_to_ptr.vmem [resolvable:$true] %s47
      %53 = dma.hbm_to_vmem [thread:$0]  %s46, 6144, %s48, [#allocation7], 384, 384, 24
    $region21: #{tpu_custom_call.1} parent=1 // pred_fallthru
      _
    // Predicated region
    $region22: #{tpu_custom_call.1} parent=1 // pred_check
      _
    $region23: #{tpu_custom_call.1} parent=1 // pred_check_branch
      %55 = sbr.rel (0) target = $region25
    $region24: #{tpu_custom_call.1} parent=1 // pred_region
      %57 = vsyncadd [#allocation7], 0
      %s58 = sshll.u32 %s5, 4
      %s59 = int_to_ptr.hbm [resolvable:$true] %s58
      %s60 = sshll.u32 [#allocation8], 4
      %s61 = int_to_ptr.vmem [resolvable:$true] %s60
      %66 = dma.hbm_to_vmem [thread:$0]  %s59, 6144, %s61, [#allocation7], 384, 384, 24
    $region25: #{tpu_custom_call.1} parent=1 // pred_fallthru
      _
    // Predicated region
    $region26: #{tpu_custom_call.1} parent=1 // pred_check
      _
    $region27: #{tpu_custom_call.1} parent=1 // pred_check_branch
      %68 = sbr.rel (0) target = $region29
    $region28: #{tpu_custom_call.1} parent=1 // pred_region
      _
    $region29: #{tpu_custom_call.1} parent=1 // pred_fallthru
      _
    // Predicated region
    $region30: #{tpu_custom_call.1} parent=1 // pred_check
      _
    $region31: #{tpu_custom_call.1} parent=1 // pred_check_branch
      %70 = sbr.rel (0) target = $region33
    $region32: #{tpu_custom_call.1} parent=1 // pred_region
      _
    $region33: #{tpu_custom_call.1} parent=1 // pred_fallthru
      _
    // Predicated region
    $region34: #{tpu_custom_call.1} parent=1 // pred_check
      _
    $region35: #{tpu_custom_call.1} parent=1 // pred_check_branch
      %72 = sbr.rel (0) target = $region37
    $region36: #{tpu_custom_call.1} parent=1 // pred_region
      %74 = vsyncadd [#allocation10], 0
      %s75 = sshll.u32 %s8, 4
      %s76 = int_to_ptr.hbm [resolvable:$true] %s75
      %s77 = sshll.u32 [#allocation9], 4
      %s78 = int_to_ptr.vmem [resolvable:$true] %s77
      %83 = dma.hbm_to_vmem [thread:$0]  %s76, 2048, %s78, [#allocation10], 128, 128, 8
    $region37: #{tpu_custom_call.1} parent=1 // pred_fallthru
      _
    // Predicated region
    $region38: #{tpu_custom_call.1} parent=1 // pred_check
      _
    $region39: #{tpu_custom_call.1} parent=1 // pred_check_branch
      %85 = sbr.rel (0) target = $region41
    $region40: #{tpu_custom_call.1} parent=1 // pred_region
      _
    $region41: #{tpu_custom_call.1} parent=1 // pred_fallthru
      _
    // Predicated region
    $region42: #{tpu_custom_call.1} parent=1 // pred_check
      _
    $region43: #{tpu_custom_call.1} parent=1 // pred_check_branch
      %87 = sbr.rel (0) target = $region45
    $region44: #{tpu_custom_call.1} parent=1 // pred_region
      %89 = dma.done [#allocation4], 2048
    $region45: #{tpu_custom_call.1} parent=1 // pred_fallthru
      _
    // Predicated region
    $region46: #{tpu_custom_call.1} parent=1 // pred_check
      _
    $region47: #{tpu_custom_call.1} parent=1 // pred_check_branch
      %91 = sbr.rel (0) target = $region49
    $region48: #{tpu_custom_call.1} parent=1 // pred_region
      %93 = dma.done [#allocation7], 6144
    $region49: #{tpu_custom_call.1} parent=1 // pred_fallthru
      _
    // Predicated region
    $region50: #{tpu_custom_call.1} parent=1 // pred_check
      _
    $region51: #{tpu_custom_call.1} parent=1 // pred_check_branch
      %95 = sbr.rel (0) target = $region53
    $region52: #{tpu_custom_call.1} parent=1 // pred_region
      %97 = dma.done [#allocation7], 6144
    $region53: #{tpu_custom_call.1} parent=1 // pred_fallthru
      _
    // Predicated region
    $region54: #{tpu_custom_call.1} parent=1 // pred_check
      _
    $region55: #{tpu_custom_call.1} parent=1 // pred_check_branch
      %99 = sbr.rel (0) target = $region57
    $region56: #{tpu_custom_call.1} parent=1 // pred_region
      %101 = dma.done [#allocation10], 2048
    $region57: #{tpu_custom_call.1} parent=1 // pred_fallthru
      _
    %v102 = vld [vmem:[%s0] sm:$0xff]
    %v103 = vld [vmem:[%s0 + $0x8] sm:$0xff]
    %v104 = vlaneseq
    %v105 = vand.u32 %v104, 127
    %106 = vset.pattern.permute.xlu0 0
    %107 = vperm.xlu0 %106, %v102
    %v108 = vpop.permute.xlu0 %107
    %109 = vset.pattern.permute.xlu0 0
    %110 = vperm.xlu0 %109, %v103
    %v111 = vpop.permute.xlu0 %110
    %vm112 = vcmp.eq.s32.totalorder %v105, %v108
    %vm113 = vcmp.eq.s32.totalorder %v105, %v111
    %v114 = vsel %vm112, 1, 0
    %v115 = vsel %vm113, 1, 0
    %v116 = vcvt.s32.f32 %v114
    %v117 = vcvt.s32.f32 %v115
    %v118 = vld [vmem:[#allocation3] sm:$0xff]
    %v119 = vld [vmem:[#allocation3 + $0x8] sm:$0xff]
    %v120 = vld [vmem:[#allocation3 + $0x10] sm:$0xff]
    %v121 = vld [vmem:[#allocation3 + $0x18] sm:$0xff]
    %v122 = vld [vmem:[#allocation3 + $0x20] sm:$0xff]
    %v123 = vld [vmem:[#allocation3 + $0x28] sm:$0xff]
    %v124 = vld [vmem:[#allocation3 + $0x30] sm:$0xff]
    %v125 = vld [vmem:[#allocation3 + $0x38] sm:$0xff]
    %v126 = vld [vmem:[#allocation3 + $0x40] sm:$0xff]
    %v127 = vld [vmem:[#allocation3 + $0x48] sm:$0xff]
    %v128 = vld [vmem:[#allocation3 + $0x50] sm:$0xff]
    %v129 = vld [vmem:[#allocation3 + $0x58] sm:$0xff]
    %v130 = vld [vmem:[#allocation3 + $0x60] sm:$0xff]
    %v131 = vld [vmem:[#allocation3 + $0x68] sm:$0xff]
    %v132 = vld [vmem:[#allocation3 + $0x70] sm:$0xff]
    %v133 = vld [vmem:[#allocation3 + $0x78] sm:$0xff]
    %134 = vmatpush.msra.mxu0 %v133
    %135 = vmatpush.msra.mxu0 %v132
    %136 = vmatpush.msra.mxu0 %v131
    %137 = vmatpush.msra.mxu0 %v130
    %138 = vmatpush.msra.mxu0 %v129
    %139 = vmatpush.msra.mxu0 %v128
    %140 = vmatpush.msra.mxu0 %v127
    %141 = vmatpush.msra.mxu0 %v126
    %142 = vmatpush.msra.mxu0 %v125
    %143 = vmatpush.msra.mxu0 %v124
    %144 = vmatpush.msra.mxu0 %v123
    %145 = vmatpush.msra.mxu0 %v122
    %146 = vmatpush.msra.mxu0 %v121
    %147 = vmatpush.msra.mxu0 %v120
    %148 = vmatpush.msra.mxu0 %v119
    %149 = vmatpush.msra.mxu0 %v118
    %150 = vmatmul.f32.gmra.mxu0 %v116
    %v151 = vpop.f32.mrf.mxu0
    %v152 = vadd.f32 0.0, %v151
    %153 = vmatmul.f32.gmra.mxu0 %v117
    %v154 = vpop.f32.mrf.mxu0
    %v155 = vadd.f32 0.0, %v154
    %156 = vdwg.mxu0
    %v157 = vld [vmem:[#allocation6] sm:$0xff]
    %v158 = vld [vmem:[#allocation6 + $0x8] sm:$0xff]
    %v159 = vld [vmem:[#allocation6 + $0x10] sm:$0xff]
    %v160 = vld [vmem:[#allocation6 + $0x18] sm:$0xff]
    %v161 = vld [vmem:[#allocation6 + $0x20] sm:$0xff]
    %v162 = vld [vmem:[#allocation6 + $0x28] sm:$0xff]
    %v163 = vld [vmem:[#allocation6 + $0x30] sm:$0xff]
    %v164 = vld [vmem:[#allocation6 + $0x38] sm:$0xff]
    %v165 = vld [vmem:[#allocation6 + $0x40] sm:$0xff]
    %v166 = vld [vmem:[#allocation6 + $0x48] sm:$0xff]
    %v167 = vld [vmem:[#allocation6 + $0x50] sm:$0xff]
    %v168 = vld [vmem:[#allocation6 + $0x58] sm:$0xff]
    %v169 = vld [vmem:[#allocation6 + $0x60] sm:$0xff]
    %v170 = vld [vmem:[#allocation6 + $0x68] sm:$0xff]
    %v171 = vld [vmem:[#allocation6 + $0x70] sm:$0xff]
    %v172 = vld [vmem:[#allocation6 + $0x78] sm:$0xff]
    %v173 = vld [vmem:[#allocation6 + $0x80] sm:$0xff]
    %v174 = vld [vmem:[#allocation6 + $0x88] sm:$0xff]
    %v175 = vld [vmem:[#allocation6 + $0x90] sm:$0xff]
    %v176 = vld [vmem:[#allocation6 + $0x98] sm:$0xff]
    %v177 = vld [vmem:[#allocation6 + $0xa0] sm:$0xff]
    %v178 = vld [vmem:[#allocation6 + $0xa8] sm:$0xff]
    %v179 = vld [vmem:[#allocation6 + $0xb0] sm:$0xff]
    %v180 = vld [vmem:[#allocation6 + $0xb8] sm:$0xff]
    %v181 = vld [vmem:[#allocation6 + $0xc0] sm:$0xff]
    %v182 = vld [vmem:[#allocation6 + $0xc8] sm:$0xff]
    %v183 = vld [vmem:[#allocation6 + $0xd0] sm:$0xff]
    %v184 = vld [vmem:[#allocation6 + $0xd8] sm:$0xff]
    %v185 = vld [vmem:[#allocation6 + $0xe0] sm:$0xff]
    %v186 = vld [vmem:[#allocation6 + $0xe8] sm:$0xff]
    %v187 = vld [vmem:[#allocation6 + $0xf0] sm:$0xff]
    %v188 = vld [vmem:[#allocation6 + $0xf8] sm:$0xff]
    %v189 = vld [vmem:[#allocation6 + $0x100] sm:$0xff]
    %v190 = vld [vmem:[#allocation6 + $0x108] sm:$0xff]
    %v191 = vld [vmem:[#allocation6 + $0x110] sm:$0xff]
    %v192 = vld [vmem:[#allocation6 + $0x118] sm:$0xff]
    %v193 = vld [vmem:[#allocation6 + $0x120] sm:$0xff]
    %v194 = vld [vmem:[#allocation6 + $0x128] sm:$0xff]
    %v195 = vld [vmem:[#allocation6 + $0x130] sm:$0xff]
    %v196 = vld [vmem:[#allocation6 + $0x138] sm:$0xff]
    %v197 = vld [vmem:[#allocation6 + $0x140] sm:$0xff]
    %v198 = vld [vmem:[#allocation6 + $0x148] sm:$0xff]
    %v199 = vld [vmem:[#allocation6 + $0x150] sm:$0xff]
    %v200 = vld [vmem:[#allocation6 + $0x158] sm:$0xff]
    %v201 = vld [vmem:[#allocation6 + $0x160] sm:$0xff]
    %v202 = vld [vmem:[#allocation6 + $0x168] sm:$0xff]
    %v203 = vld [vmem:[#allocation6 + $0x170] sm:$0xff]
    %v204 = vld [vmem:[#allocation6 + $0x178] sm:$0xff]
    %v205 = vld [vmem:[%s6] sm:$0x7]
    %v207 = vperm.slane %v205, 0
    %v208 = vperm.slane %v205, 1
    %v209 = vperm.slane %v205, 2
    %213 = vmatpush.msra.mxu0 %v202
    %214 = vmatpush.msra.mxu0 %v199
    %215 = vmatpush.msra.mxu0 %v196
    %216 = vmatpush.msra.mxu0 %v193
    %217 = vmatpush.msra.mxu0 %v190
    %218 = vmatpush.msra.mxu0 %v187
    %219 = vmatpush.msra.mxu0 %v184
    %220 = vmatpush.msra.mxu0 %v181
    %221 = vmatpush.msra.mxu0 %v178
    %222 = vmatpush.msra.mxu0 %v175
    %223 = vmatpush.msra.mxu0 %v172
    %224 = vmatpush.msra.mxu0 %v169
    %225 = vmatpush.msra.mxu0 %v166
    %226 = vmatpush.msra.mxu0 %v163
    %227 = vmatpush.msra.mxu0 %v160
    %228 = vmatpush.msra.mxu0 %v157
    %229 = vmatmul.f32.gmra.mxu0 %v152
    %v230 = vpop.f32.mrf.mxu0
    %v231 = vadd.f32 %v207, %v230
    %232 = vmatmul.f32.gmra.mxu0 %v155
    %v233 = vpop.f32.mrf.mxu0
    %v234 = vadd.f32 %v207, %v233
    %235 = vdwg.mxu0
    %236 = vmatpush.msra.mxu0 %v203
    %237 = vmatpush.msra.mxu0 %v200
    %238 = vmatpush.msra.mxu0 %v197
    %239 = vmatpush.msra.mxu0 %v194
    %240 = vmatpush.msra.mxu0 %v191
    %241 = vmatpush.msra.mxu0 %v188
    %242 = vmatpush.msra.mxu0 %v185
    %243 = vmatpush.msra.mxu0 %v182
    %244 = vmatpush.msra.mxu0 %v179
    %245 = vmatpush.msra.mxu0 %v176
    %246 = vmatpush.msra.mxu0 %v173
    %247 = vmatpush.msra.mxu0 %v170
    %248 = vmatpush.msra.mxu0 %v167
    %249 = vmatpush.msra.mxu0 %v164
    %250 = vmatpush.msra.mxu0 %v161
    %251 = vmatpush.msra.mxu0 %v158
    %252 = vmatmul.f32.gmra.mxu0 %v152
    %v253 = vpop.f32.mrf.mxu0
    %v254 = vadd.f32 %v208, %v253
    %255 = vmatmul.f32.gmra.mxu0 %v155
    %v256 = vpop.f32.mrf.mxu0
    %v257 = vadd.f32 %v208, %v256
    %258 = vdwg.mxu0
    %259 = vmatpush.msra.mxu0 %v204
    %260 = vmatpush.msra.mxu0 %v201
    %261 = vmatpush.msra.mxu0 %v198
    %262 = vmatpush.msra.mxu0 %v195
    %263 = vmatpush.msra.mxu0 %v192
    %264 = vmatpush.msra.mxu0 %v189
    %265 = vmatpush.msra.mxu0 %v186
    %266 = vmatpush.msra.mxu0 %v183
    %267 = vmatpush.msra.mxu0 %v180
    %268 = vmatpush.msra.mxu0 %v177
    %269 = vmatpush.msra.mxu0 %v174
    %270 = vmatpush.msra.mxu0 %v171
    %271 = vmatpush.msra.mxu0 %v168
    %272 = vmatpush.msra.mxu0 %v165
    %273 = vmatpush.msra.mxu0 %v162
    %274 = vmatpush.msra.mxu0 %v159
    %275 = vmatmul.f32.gmra.mxu0 %v152
    %v276 = vpop.f32.mrf.mxu0
    %v277 = vadd.f32 %v209, %v276
    %278 = vmatmul.f32.gmra.mxu0 %v155
    %v279 = vpop.f32.mrf.mxu0
    %v280 = vadd.f32 %v209, %v279
    %281 = vdwg.mxu0
    %v282 = vld [vmem:[#allocation8] sm:$0xff]
    %v283 = vld [vmem:[#allocation8 + $0x8] sm:$0xff]
    %v284 = vld [vmem:[#allocation8 + $0x10] sm:$0xff]
    %v285 = vld [vmem:[#allocation8 + $0x18] sm:$0xff]
    %v286 = vld [vmem:[#allocation8 + $0x20] sm:$0xff]
    %v287 = vld [vmem:[#allocation8 + $0x28] sm:$0xff]
    %v288 = vld [vmem:[#allocation8 + $0x30] sm:$0xff]
    %v289 = vld [vmem:[#allocation8 + $0x38] sm:$0xff]
    %v290 = vld [vmem:[#allocation8 + $0x40] sm:$0xff]
    %v291 = vld [vmem:[#allocation8 + $0x48] sm:$0xff]
    %v292 = vld [vmem:[#allocation8 + $0x50] sm:$0xff]
    %v293 = vld [vmem:[#allocation8 + $0x58] sm:$0xff]
    %v294 = vld [vmem:[#allocation8 + $0x60] sm:$0xff]
    %v295 = vld [vmem:[#allocation8 + $0x68] sm:$0xff]
    %v296 = vld [vmem:[#allocation8 + $0x70] sm:$0xff]
    %v297 = vld [vmem:[#allocation8 + $0x78] sm:$0xff]
    %v298 = vld [vmem:[#allocation8 + $0x80] sm:$0xff]
    %v299 = vld [vmem:[#allocation8 + $0x88] sm:$0xff]
    %v300 = vld [vmem:[#allocation8 + $0x90] sm:$0xff]
    %v301 = vld [vmem:[#allocation8 + $0x98] sm:$0xff]
    %v302 = vld [vmem:[#allocation8 + $0xa0] sm:$0xff]
    %v303 = vld [vmem:[#allocation8 + $0xa8] sm:$0xff]
    %v304 = vld [vmem:[#allocation8 + $0xb0] sm:$0xff]
    %v305 = vld [vmem:[#allocation8 + $0xb8] sm:$0xff]
    %v306 = vld [vmem:[#allocation8 + $0xc0] sm:$0xff]
    %v307 = vld [vmem:[#allocation8 + $0xc8] sm:$0xff]
    %v308 = vld [vmem:[#allocation8 + $0xd0] sm:$0xff]
    %v309 = vld [vmem:[#allocation8 + $0xd8] sm:$0xff]
    %v310 = vld [vmem:[#allocation8 + $0xe0] sm:$0xff]
    %v311 = vld [vmem:[#allocation8 + $0xe8] sm:$0xff]
    %v312 = vld [vmem:[#allocation8 + $0xf0] sm:$0xff]
    %v313 = vld [vmem:[#allocation8 + $0xf8] sm:$0xff]
    %v314 = vld [vmem:[#allocation8 + $0x100] sm:$0xff]
    %v315 = vld [vmem:[#allocation8 + $0x108] sm:$0xff]
    %v316 = vld [vmem:[#allocation8 + $0x110] sm:$0xff]
    %v317 = vld [vmem:[#allocation8 + $0x118] sm:$0xff]
    %v318 = vld [vmem:[#allocation8 + $0x120] sm:$0xff]
    %v319 = vld [vmem:[#allocation8 + $0x128] sm:$0xff]
    %v320 = vld [vmem:[#allocation8 + $0x130] sm:$0xff]
    %v321 = vld [vmem:[#allocation8 + $0x138] sm:$0xff]
    %v322 = vld [vmem:[#allocation8 + $0x140] sm:$0xff]
    %v323 = vld [vmem:[#allocation8 + $0x148] sm:$0xff]
    %v324 = vld [vmem:[#allocation8 + $0x150] sm:$0xff]
    %v325 = vld [vmem:[#allocation8 + $0x158] sm:$0xff]
    %v326 = vld [vmem:[#allocation8 + $0x160] sm:$0xff]
    %v327 = vld [vmem:[#allocation8 + $0x168] sm:$0xff]
    %v328 = vld [vmem:[#allocation8 + $0x170] sm:$0xff]
    %v329 = vld [vmem:[#allocation8 + $0x178] sm:$0xff]
    %v330 = vld [vmem:[%s7] sm:$0x7]
    %v331 = vld [vmem:[%s1] sm:$0x3]
    %v332 = vld [vmem:[%s2] sm:$0x3]
    %v334 = vperm.slane %v330, 0
    %v335 = vperm.slane %v330, 1
    %v336 = vperm.slane %v330, 2
    %340 = vmatpush.msra.mxu0 %v327
    %341 = vmatpush.msra.mxu0 %v324
    %342 = vmatpush.msra.mxu0 %v321
    %343 = vmatpush.msra.mxu0 %v318
    %344 = vmatpush.msra.mxu0 %v315
    %345 = vmatpush.msra.mxu0 %v312
    %346 = vmatpush.msra.mxu0 %v309
    %347 = vmatpush.msra.mxu0 %v306
    %348 = vmatpush.msra.mxu0 %v303
    %349 = vmatpush.msra.mxu0 %v300
    %350 = vmatpush.msra.mxu0 %v297
    %351 = vmatpush.msra.mxu0 %v294
    %352 = vmatpush.msra.mxu0 %v291
    %353 = vmatpush.msra.mxu0 %v288
    %354 = vmatpush.msra.mxu0 %v285
    %355 = vmatpush.msra.mxu0 %v282
    %356 = vmatmul.f32.gmra.mxu0 %v332
    %v357 = vpop.f32.mrf.mxu0
    %v358 = vadd.f32 %v334, %v357
    %359 = vdwg.mxu0
    %360 = vmatpush.msra.mxu0 %v328
    %361 = vmatpush.msra.mxu0 %v325
    %362 = vmatpush.msra.mxu0 %v322
    %363 = vmatpush.msra.mxu0 %v319
    %364 = vmatpush.msra.mxu0 %v316
    %365 = vmatpush.msra.mxu0 %v313
    %366 = vmatpush.msra.mxu0 %v310
    %367 = vmatpush.msra.mxu0 %v307
    %368 = vmatpush.msra.mxu0 %v304
    %369 = vmatpush.msra.mxu0 %v301
    %370 = vmatpush.msra.mxu0 %v298
    %371 = vmatpush.msra.mxu0 %v295
    %372 = vmatpush.msra.mxu0 %v292
    %373 = vmatpush.msra.mxu0 %v289
    %374 = vmatpush.msra.mxu0 %v286
    %375 = vmatpush.msra.mxu0 %v283
    %376 = vmatmul.f32.gmra.mxu0 %v332
    %v377 = vpop.f32.mrf.mxu0
    %v378 = vadd.f32 %v335, %v377
    %379 = vdwg.mxu0
    %380 = vmatpush.msra.mxu0 %v329
    %381 = vmatpush.msra.mxu0 %v326
    %382 = vmatpush.msra.mxu0 %v323
    %383 = vmatpush.msra.mxu0 %v320
    %384 = vmatpush.msra.mxu0 %v317
    %385 = vmatpush.msra.mxu0 %v314
    %386 = vmatpush.msra.mxu0 %v311
    %387 = vmatpush.msra.mxu0 %v308
    %388 = vmatpush.msra.mxu0 %v305
    %389 = vmatpush.msra.mxu0 %v302
    %390 = vmatpush.msra.mxu0 %v299
    %391 = vmatpush.msra.mxu0 %v296
    %392 = vmatpush.msra.mxu0 %v293
    %393 = vmatpush.msra.mxu0 %v290
    %394 = vmatpush.msra.mxu0 %v287
    %395 = vmatpush.msra.mxu0 %v284
    %396 = vmatmul.f32.gmra.mxu0 %v332
    %v397 = vpop.f32.mrf.mxu0
    %v398 = vadd.f32 %v336, %v397
    %399 = vdwg.mxu0
    %v400 = vadd.f32 %v231, %v358
    %v401 = vxor.u32 %v400, 2147483648
    %v402 = vmul.f32 %v401, 1.442695
    %v403 = vpow.pop %v402
    %v404 = vadd.f32 %v403, 1.0
    %v405 = vrcp.pop %v404
    %v406 = vmul.f32 %v404, %v405
    %v407 = vsub.f32 1.0, %v406
    %v408 = vmul.f32 %v405, %v407
    %v409 = vadd.f32 %v405, %v408
    %vm410 = vweird.f32 %v404
    %vm411 = vweird.f32 %v405
    %vm412 = vmor %vm410, %vm411
    %v413 = vsel %vm412, %v405, %v409
    %v414 = vand.u32 2147483647, %v404
    %vm415 = vcmp.eq.f32.partialorder %v414, 8.507059e+37
    %v416 = vand.u32 %v404, 2147483648
    %v417 = vor.u32 1.1754944e-38, %v416
    %v418 = vsel %vm415, %v417, %v413
    %v419 = vmul.f32 1.0, %v418
    %v420 = vadd.f32 %v254, %v378
    %v421 = vxor.u32 %v420, 2147483648
    %v422 = vmul.f32 %v421, 1.442695
    %v423 = vpow.pop %v422
    %v424 = vadd.f32 %v423, 1.0
    %v425 = vrcp.pop %v424
    %v426 = vmul.f32 %v424, %v425
    %v427 = vsub.f32 1.0, %v426
    %v428 = vmul.f32 %v425, %v427
    %v429 = vadd.f32 %v425, %v428
    %vm430 = vweird.f32 %v424
    %vm431 = vweird.f32 %v425
    %vm432 = vmor %vm430, %vm431
    %v433 = vsel %vm432, %v425, %v429
    %v434 = vand.u32 2147483647, %v424
    %vm435 = vcmp.eq.f32.partialorder %v434, 8.507059e+37
    %v436 = vand.u32 %v424, 2147483648
    %v437 = vor.u32 1.1754944e-38, %v436
    %v438 = vsel %vm435, %v437, %v433
    %v439 = vmul.f32 1.0, %v438
    %v440 = vmul.f32 %v419, %v398
    %v441 = vadd.f32 %v277, %v440
    %v442 = vtanh.pop %v441
    %v443 = vsub.f32 1.0, %v439
    %v444 = vmul.f32 %v443, %v442
    %v445 = vmul.f32 %v439, %v332
    %v446 = vadd.f32 %v444, %v445
    %vm447 = vcmp.gt.s32.totalorder %v331, 0
    %v448 = vsel %vm447, 1, 0
    %449 = vset.pattern.permute.xlu0 0
    %450 = vperm.xlu0 %449, %v448
    %v451 = vpop.permute.xlu0 %450
    %vm452 = vcmp.eq.s32.totalorder %v451, 1
    %v453 = vsel %vm452, %v446, 0.0
    %v454 = vsel %vm452, %v446, %v332
    %455 = vst [vmem:[#allocation2] sm:$0x1] %v453
    %456 = vst [vmem:[#allocation2 + $0x7] sm:$0x2] %v453
    %457 = vmatpush.msra.mxu0 %v327
    %458 = vmatpush.msra.mxu0 %v324
    %459 = vmatpush.msra.mxu0 %v321
    %460 = vmatpush.msra.mxu0 %v318
    %461 = vmatpush.msra.mxu0 %v315
    %462 = vmatpush.msra.mxu0 %v312
    %463 = vmatpush.msra.mxu0 %v309
    %464 = vmatpush.msra.mxu0 %v306
    %465 = vmatpush.msra.mxu0 %v303
    %466 = vmatpush.msra.mxu0 %v300
    %467 = vmatpush.msra.mxu0 %v297
    %468 = vmatpush.msra.mxu0 %v294
    %469 = vmatpush.msra.mxu0 %v291
    %470 = vmatpush.msra.mxu0 %v288
    %471 = vmatpush.msra.mxu0 %v285
    %472 = vmatpush.msra.mxu0 %v282
    %473 = vmatmul.f32.gmra.mxu0 %v454
    %v474 = vpop.f32.mrf.mxu0
    %v475 = vadd.f32 %v334, %v474
    %476 = vdwg.mxu0
    %477 = vmatpush.msra.mxu0 %v328
    %478 = vmatpush.msra.mxu0 %v325
    %479 = vmatpush.msra.mxu0 %v322
    %480 = vmatpush.msra.mxu0 %v319
    %481 = vmatpush.msra.mxu0 %v316
    %482 = vmatpush.msra.mxu0 %v313
    %483 = vmatpush.msra.mxu0 %v310
    %484 = vmatpush.msra.mxu0 %v307
    %485 = vmatpush.msra.mxu0 %v304
    %486 = vmatpush.msra.mxu0 %v301
    %487 = vmatpush.msra.mxu0 %v298
    %488 = vmatpush.msra.mxu0 %v295
    %489 = vmatpush.msra.mxu0 %v292
    %490 = vmatpush.msra.mxu0 %v289
    %491 = vmatpush.msra.mxu0 %v286
    %492 = vmatpush.msra.mxu0 %v283
    %493 = vmatmul.f32.gmra.mxu0 %v454
    %v494 = vpop.f32.mrf.mxu0
    %v495 = vadd.f32 %v335, %v494
    %496 = vdwg.mxu0
    %497 = vmatpush.msra.mxu0 %v329
    %498 = vmatpush.msra.mxu0 %v326
    %499 = vmatpush.msra.mxu0 %v323
    %500 = vmatpush.msra.mxu0 %v320
    %501 = vmatpush.msra.mxu0 %v317
    %502 = vmatpush.msra.mxu0 %v314
    %503 = vmatpush.msra.mxu0 %v311
    %504 = vmatpush.msra.mxu0 %v308
    %505 = vmatpush.msra.mxu0 %v305
    %506 = vmatpush.msra.mxu0 %v302
    %507 = vmatpush.msra.mxu0 %v299
    %508 = vmatpush.msra.mxu0 %v296
    %509 = vmatpush.msra.mxu0 %v293
    %510 = vmatpush.msra.mxu0 %v290
    %511 = vmatpush.msra.mxu0 %v287
    %512 = vmatpush.msra.mxu0 %v284
    %513 = vmatmul.f32.gmra.mxu0 %v454
    %v514 = vpop.f32.mrf.mxu0
    %v515 = vadd.f32 %v336, %v514
    %516 = vdwg.mxu0
    %v518 = vrot.slane %v475, 6
    %v520 = vadd.f32 %v231, %v518
    %v521 = vxor.u32 %v520, 2147483648
    %v522 = vmul.f32 %v521, 1.442695
    %v523 = vpow.pop %v522
    %v524 = vadd.f32 %v523, 1.0
    %v525 = vrcp.pop %v524
    %v526 = vmul.f32 %v524, %v525
    %v527 = vsub.f32 1.0, %v526
    %v528 = vmul.f32 %v525, %v527
    %v529 = vadd.f32 %v525, %v528
    %vm530 = vweird.f32 %v524
    %vm531 = vweird.f32 %v525
    %vm532 = vmor %vm530, %vm531
    %v533 = vsel %vm532, %v525, %v529
    %v534 = vand.u32 2147483647, %v524
    %vm535 = vcmp.eq.f32.partialorder %v534, 8.507059e+37
    %v536 = vand.u32 %v524, 2147483648
    %v537 = vor.u32 1.1754944e-38, %v536
    %v538 = vsel %vm535, %v537, %v533
    %v539 = vmul.f32 1.0, %v538
    %v541 = vrot.slane %v495, 6
    %v543 = vadd.f32 %v254, %v541
    %v544 = vxor.u32 %v543, 2147483648
    %v545 = vmul.f32 %v544, 1.442695
    %v546 = vpow.pop %v545
    %v547 = vadd.f32 %v546, 1.0
    %v548 = vrcp.pop %v547
    %v549 = vmul.f32 %v547, %v548
    %v550 = vsub.f32 1.0, %v549
    %v551 = vmul.f32 %v548, %v550
    %v552 = vadd.f32 %v548, %v551
    %vm553 = vweird.f32 %v547
    %vm554 = vweird.f32 %v548
    %vm555 = vmor %vm553, %vm554
    %v556 = vsel %vm555, %v548, %v552
    %v557 = vand.u32 2147483647, %v547
    %vm558 = vcmp.eq.f32.partialorder %v557, 8.507059e+37
    %v559 = vand.u32 %v547, 2147483648
    %v560 = vor.u32 1.1754944e-38, %v559
    %v561 = vsel %vm558, %v560, %v556
    %v562 = vmul.f32 1.0, %v561
    %v564 = vrot.slane %v515, 6
    %v566 = vmul.f32 %v539, %v564
    %v567 = vadd.f32 %v277, %v566
    %v568 = vtanh.pop %v567
    %v569 = vsub.f32 1.0, %v562
    %v570 = vmul.f32 %v569, %v568
    %v572 = vrot.slane %v454, 6
    %v574 = vmul.f32 %v562, %v572
    %v575 = vadd.f32 %v570, %v574
    %vm576 = vcmp.gt.s32.totalorder %v331, 1
    %v577 = vsel %vm576, 1, 0
    %578 = vset.pattern.permute.xlu0 0
    %579 = vperm.xlu0 %578, %v577
    %v580 = vpop.permute.xlu0 %579
    %vm581 = vcmp.eq.s32.totalorder %v580, 1
    %v583 = vrot.slane %v575, 2
    %v585 = vsel %vm581, %v583, 0.0
    %v586 = vsel %vm581, %v583, %v454
    %587 = vst [vmem:[#allocation2 + $0x1] sm:$0x1] %v585
    %588 = vst [vmem:[#allocation2 + $0x8] sm:$0x2] %v585
    %589 = vmatpush.msra.mxu0 %v327
    %590 = vmatpush.msra.mxu0 %v324
    %591 = vmatpush.msra.mxu0 %v321
    %592 = vmatpush.msra.mxu0 %v318
    %593 = vmatpush.msra.mxu0 %v315
    %594 = vmatpush.msra.mxu0 %v312
    %595 = vmatpush.msra.mxu0 %v309
    %596 = vmatpush.msra.mxu0 %v306
    %597 = vmatpush.msra.mxu0 %v303
    %598 = vmatpush.msra.mxu0 %v300
    %599 = vmatpush.msra.mxu0 %v297
    %600 = vmatpush.msra.mxu0 %v294
    %601 = vmatpush.msra.mxu0 %v291
    %602 = vmatpush.msra.mxu0 %v288
    %603 = vmatpush.msra.mxu0 %v285
    %604 = vmatpush.msra.mxu0 %v282
    %605 = vmatmul.f32.gmra.mxu0 %v586
    %v606 = vpop.f32.mrf.mxu0
    %v607 = vadd.f32 %v334, %v606
    %608 = vdwg.mxu0
    %609 = vmatpush.msra.mxu0 %v328
    %610 = vmatpush.msra.mxu0 %v325
    %611 = vmatpush.msra.mxu0 %v322
    %612 = vmatpush.msra.mxu0 %v319
    %613 = vmatpush.msra.mxu0 %v316
    %614 = vmatpush.msra.mxu0 %v313
    %615 = vmatpush.msra.mxu0 %v310
    %616 = vmatpush.msra.mxu0 %v307
    %617 = vmatpush.msra.mxu0 %v304
    %618 = vmatpush.msra.mxu0 %v301
    %619 = vmatpush.msra.mxu0 %v298
    %620 = vmatpush.msra.mxu0 %v295
    %621 = vmatpush.msra.mxu0 %v292
    %622 = vmatpush.msra.mxu0 %v289
    %623 = vmatpush.msra.mxu0 %v286
    %624 = vmatpush.msra.mxu0 %v283
    %625 = vmatmul.f32.gmra.mxu0 %v586
    %v626 = vpop.f32.mrf.mxu0
    %v627 = vadd.f32 %v335, %v626
    %628 = vdwg.mxu0
    %629 = vmatpush.msra.mxu0 %v329
    %630 = vmatpush.msra.mxu0 %v326
    %631 = vmatpush.msra.mxu0 %v323
    %632 = vmatpush.msra.mxu0 %v320
    %633 = vmatpush.msra.mxu0 %v317
    %634 = vmatpush.msra.mxu0 %v314
    %635 = vmatpush.msra.mxu0 %v311
    %636 = vmatpush.msra.mxu0 %v308
    %637 = vmatpush.msra.mxu0 %v305
    %638 = vmatpush.msra.mxu0 %v302
    %639 = vmatpush.msra.mxu0 %v299
    %640 = vmatpush.msra.mxu0 %v296
    %641 = vmatpush.msra.mxu0 %v293
    %642 = vmatpush.msra.mxu0 %v290
    %643 = vmatpush.msra.mxu0 %v287
    %644 = vmatpush.msra.mxu0 %v284
    %645 = vmatmul.f32.gmra.mxu0 %v586
    %v646 = vpop.f32.mrf.mxu0
    %v647 = vadd.f32 %v336, %v646
    %648 = vdwg.mxu0
    %v650 = vrot.slane %v607, 4
    %v652 = vadd.f32 %v231, %v650
    %v653 = vxor.u32 %v652, 2147483648
    %v654 = vmul.f32 %v653, 1.442695
    %v655 = vpow.pop %v654
    %v656 = vadd.f32 %v655, 1.0
    %v657 = vrcp.pop %v656
    %v658 = vmul.f32 %v656, %v657
    %v659 = vsub.f32 1.0, %v658
    %v660 = vmul.f32 %v657, %v659
    %v661 = vadd.f32 %v657, %v660
    %vm662 = vweird.f32 %v656
    %vm663 = vweird.f32 %v657
    %vm664 = vmor %vm662, %vm663
    %v665 = vsel %vm664, %v657, %v661
    %v666 = vand.u32 2147483647, %v656
    %vm667 = vcmp.eq.f32.partialorder %v666, 8.507059e+37
    %v668 = vand.u32 %v656, 2147483648
    %v669 = vor.u32 1.1754944e-38, %v668
    %v670 = vsel %vm667, %v669, %v665
    %v671 = vmul.f32 1.0, %v670
    %v673 = vrot.slane %v627, 4
    %v675 = vadd.f32 %v254, %v673
    %v676 = vxor.u32 %v675, 2147483648
    %v677 = vmul.f32 %v676, 1.442695
    %v678 = vpow.pop %v677
    %v679 = vadd.f32 %v678, 1.0
    %v680 = vrcp.pop %v679
    %v681 = vmul.f32 %v679, %v680
    %v682 = vsub.f32 1.0, %v681
    %v683 = vmul.f32 %v680, %v682
    %v684 = vadd.f32 %v680, %v683
    %vm685 = vweird.f32 %v679
    %vm686 = vweird.f32 %v680
    %vm687 = vmor %vm685, %vm686
    %v688 = vsel %vm687, %v680, %v684
    %v689 = vand.u32 2147483647, %v679
    %vm690 = vcmp.eq.f32.partialorder %v689, 8.507059e+37
    %v691 = vand.u32 %v679, 2147483648
    %v692 = vor.u32 1.1754944e-38, %v691
    %v693 = vsel %vm690, %v692, %v688
    %v694 = vmul.f32 1.0, %v693
    %v696 = vrot.slane %v647, 4
    %v698 = vmul.f32 %v671, %v696
    %v699 = vadd.f32 %v277, %v698
    %v700 = vtanh.pop %v699
    %v701 = vsub.f32 1.0, %v694
    %v702 = vmul.f32 %v701, %v700
    %v704 = vrot.slane %v586, 4
    %v706 = vmul.f32 %v694, %v704
    %v707 = vadd.f32 %v702, %v706
    %vm708 = vcmp.gt.s32.totalorder %v331, 2
    %v709 = vsel %vm708, 1, 0
    %710 = vset.pattern.permute.xlu0 0
    %711 = vperm.xlu0 %710, %v709
    %v712 = vpop.permute.xlu0 %711
    %vm713 = vcmp.eq.s32.totalorder %v712, 1
    %v715 = vrot.slane %v707, 4
    %v717 = vsel %vm713, %v715, 0.0
    %v718 = vsel %vm713, %v715, %v586
    %719 = vst [vmem:[#allocation2 + $0x2] sm:$0x1] %v717
    %720 = vst [vmem:[#allocation2 + $0x9] sm:$0x2] %v717
    %721 = vmatpush.msra.mxu0 %v327
    %722 = vmatpush.msra.mxu0 %v324
    %723 = vmatpush.msra.mxu0 %v321
    %724 = vmatpush.msra.mxu0 %v318
    %725 = vmatpush.msra.mxu0 %v315
    %726 = vmatpush.msra.mxu0 %v312
    %727 = vmatpush.msra.mxu0 %v309
    %728 = vmatpush.msra.mxu0 %v306
    %729 = vmatpush.msra.mxu0 %v303
    %730 = vmatpush.msra.mxu0 %v300
    %731 = vmatpush.msra.mxu0 %v297
    %732 = vmatpush.msra.mxu0 %v294
    %733 = vmatpush.msra.mxu0 %v291
    %734 = vmatpush.msra.mxu0 %v288
    %735 = vmatpush.msra.mxu0 %v285
    %736 = vmatpush.msra.mxu0 %v282
    %737 = vmatmul.f32.gmra.mxu0 %v718
    %v738 = vpop.f32.mrf.mxu0
    %v739 = vadd.f32 %v334, %v738
    %740 = vdwg.mxu0
    %741 = vmatpush.msra.mxu0 %v328
    %742 = vmatpush.msra.mxu0 %v325
    %743 = vmatpush.msra.mxu0 %v322
    %744 = vmatpush.msra.mxu0 %v319
    %745 = vmatpush.msra.mxu0 %v316
    %746 = vmatpush.msra.mxu0 %v313
    %747 = vmatpush.msra.mxu0 %v310
    %748 = vmatpush.msra.mxu0 %v307
    %749 = vmatpush.msra.mxu0 %v304
    %750 = vmatpush.msra.mxu0 %v301
    %751 = vmatpush.msra.mxu0 %v298
    %752 = vmatpush.msra.mxu0 %v295
    %753 = vmatpush.msra.mxu0 %v292
    %754 = vmatpush.msra.mxu0 %v289
    %755 = vmatpush.msra.mxu0 %v286
    %756 = vmatpush.msra.mxu0 %v283
    %757 = vmatmul.f32.gmra.mxu0 %v718
    %v758 = vpop.f32.mrf.mxu0
    %v759 = vadd.f32 %v335, %v758
    %760 = vdwg.mxu0
    %761 = vmatpush.msra.mxu0 %v329
    %762 = vmatpush.msra.mxu0 %v326
    %763 = vmatpush.msra.mxu0 %v323
    %764 = vmatpush.msra.mxu0 %v320
    %765 = vmatpush.msra.mxu0 %v317
    %766 = vmatpush.msra.mxu0 %v314
    %767 = vmatpush.msra.mxu0 %v311
    %768 = vmatpush.msra.mxu0 %v308
    %769 = vmatpush.msra.mxu0 %v305
    %770 = vmatpush.msra.mxu0 %v302
    %771 = vmatpush.msra.mxu0 %v299
    %772 = vmatpush.msra.mxu0 %v296
    %773 = vmatpush.msra.mxu0 %v293
    %774 = vmatpush.msra.mxu0 %v290
    %775 = vmatpush.msra.mxu0 %v287
    %776 = vmatpush.msra.mxu0 %v284
    %777 = vmatmul.f32.gmra.mxu0 %v718
    %v778 = vpop.f32.mrf.mxu0
    %v779 = vadd.f32 %v336, %v778
    %780 = vdwg.mxu0
    %v782 = vrot.slane %v739, 2
    %v784 = vadd.f32 %v231, %v782
    %v785 = vxor.u32 %v784, 2147483648
    %v786 = vmul.f32 %v785, 1.442695
    %v787 = vpow.pop %v786
    %v788 = vadd.f32 %v787, 1.0
    %v789 = vrcp.pop %v788
    %v790 = vmul.f32 %v788, %v789
    %v791 = vsub.f32 1.0, %v790
    %v792 = vmul.f32 %v789, %v791
    %v793 = vadd.f32 %v789, %v792
    %vm794 = vweird.f32 %v788
    %vm795 = vweird.f32 %v789
    %vm796 = vmor %vm794, %vm795
    %v797 = vsel %vm796, %v789, %v793
    %v798 = vand.u32 2147483647, %v788
    %vm799 = vcmp.eq.f32.partialorder %v798, 8.507059e+37
    %v800 = vand.u32 %v788, 2147483648
    %v801 = vor.u32 1.1754944e-38, %v800
    %v802 = vsel %vm799, %v801, %v797
    %v803 = vmul.f32 1.0, %v802
    %v805 = vrot.slane %v759, 2
    %v807 = vadd.f32 %v254, %v805
    %v808 = vxor.u32 %v807, 2147483648
    %v809 = vmul.f32 %v808, 1.442695
    %v810 = vpow.pop %v809
    %v811 = vadd.f32 %v810, 1.0
    %v812 = vrcp.pop %v811
    %v813 = vmul.f32 %v811, %v812
    %v814 = vsub.f32 1.0, %v813
    %v815 = vmul.f32 %v812, %v814
    %v816 = vadd.f32 %v812, %v815
    %vm817 = vweird.f32 %v811
    %vm818 = vweird.f32 %v812
    %vm819 = vmor %vm817, %vm818
    %v820 = vsel %vm819, %v812, %v816
    %v821 = vand.u32 2147483647, %v811
    %vm822 = vcmp.eq.f32.partialorder %v821, 8.507059e+37
    %v823 = vand.u32 %v811, 2147483648
    %v824 = vor.u32 1.1754944e-38, %v823
    %v825 = vsel %vm822, %v824, %v820
    %v826 = vmul.f32 1.0, %v825
    %v828 = vrot.slane %v779, 2
    %v830 = vmul.f32 %v803, %v828
    %v831 = vadd.f32 %v277, %v830
    %v832 = vtanh.pop %v831
    %v833 = vsub.f32 1.0, %v826
    %v834 = vmul.f32 %v833, %v832
    %v836 = vrot.slane %v718, 2
    %v838 = vmul.f32 %v826, %v836
    %v839 = vadd.f32 %v834, %v838
    %vm840 = vcmp.gt.s32.totalorder %v331, 3
    %v841 = vsel %vm840, 1, 0
    %842 = vset.pattern.permute.xlu0 0
    %843 = vperm.xlu0 %842, %v841
    %v844 = vpop.permute.xlu0 %843
    %vm845 = vcmp.eq.s32.totalorder %v844, 1
    %v847 = vrot.slane %v839, 6
    %v849 = vsel %vm845, %v847, 0.0
    %v850 = vsel %vm845, %v847, %v718
    %851 = vst [vmem:[#allocation2 + $0x3] sm:$0x1] %v849
    %852 = vst [vmem:[#allocation2 + $0xa] sm:$0x2] %v849
    %853 = vmatpush.msra.mxu0 %v327
    %854 = vmatpush.msra.mxu0 %v324
    %855 = vmatpush.msra.mxu0 %v321
    %856 = vmatpush.msra.mxu0 %v318
    %857 = vmatpush.msra.mxu0 %v315
    %858 = vmatpush.msra.mxu0 %v312
    %859 = vmatpush.msra.mxu0 %v309
    %860 = vmatpush.msra.mxu0 %v306
    %861 = vmatpush.msra.mxu0 %v303
    %862 = vmatpush.msra.mxu0 %v300
    %863 = vmatpush.msra.mxu0 %v297
    %864 = vmatpush.msra.mxu0 %v294
    %865 = vmatpush.msra.mxu0 %v291
    %866 = vmatpush.msra.mxu0 %v288
    %867 = vmatpush.msra.mxu0 %v285
    %868 = vmatpush.msra.mxu0 %v282
    %869 = vmatmul.f32.gmra.mxu0 %v850
    %v870 = vpop.f32.mrf.mxu0
    %v871 = vadd.f32 %v334, %v870
    %872 = vdwg.mxu0
    %873 = vmatpush.msra.mxu0 %v328
    %874 = vmatpush.msra.mxu0 %v325
    %875 = vmatpush.msra.mxu0 %v322
    %876 = vmatpush.msra.mxu0 %v319
    %877 = vmatpush.msra.mxu0 %v316
    %878 = vmatpush.msra.mxu0 %v313
    %879 = vmatpush.msra.mxu0 %v310
    %880 = vmatpush.msra.mxu0 %v307
    %881 = vmatpush.msra.mxu0 %v304
    %882 = vmatpush.msra.mxu0 %v301
    %883 = vmatpush.msra.mxu0 %v298
    %884 = vmatpush.msra.mxu0 %v295
    %885 = vmatpush.msra.mxu0 %v292
    %886 = vmatpush.msra.mxu0 %v289
    %887 = vmatpush.msra.mxu0 %v286
    %888 = vmatpush.msra.mxu0 %v283
    %889 = vmatmul.f32.gmra.mxu0 %v850
    %v890 = vpop.f32.mrf.mxu0
    %v891 = vadd.f32 %v335, %v890
    %892 = vdwg.mxu0
    %893 = vmatpush.msra.mxu0 %v329
    %894 = vmatpush.msra.mxu0 %v326
    %895 = vmatpush.msra.mxu0 %v323
    %896 = vmatpush.msra.mxu0 %v320
    %897 = vmatpush.msra.mxu0 %v317
    %898 = vmatpush.msra.mxu0 %v314
    %899 = vmatpush.msra.mxu0 %v311
    %900 = vmatpush.msra.mxu0 %v308
    %901 = vmatpush.msra.mxu0 %v305
    %902 = vmatpush.msra.mxu0 %v302
    %903 = vmatpush.msra.mxu0 %v299
    %904 = vmatpush.msra.mxu0 %v296
    %905 = vmatpush.msra.mxu0 %v293
    %906 = vmatpush.msra.mxu0 %v290
    %907 = vmatpush.msra.mxu0 %v287
    %908 = vmatpush.msra.mxu0 %v284
    %909 = vmatmul.f32.gmra.mxu0 %v850
    %v910 = vpop.f32.mrf.mxu0
    %v911 = vadd.f32 %v336, %v910
    %912 = vdwg.mxu0
    %v913 = vadd.f32 %v234, %v871
    %v914 = vxor.u32 %v913, 2147483648
    %v915 = vmul.f32 %v914, 1.442695
    %v916 = vpow.pop %v915
    %v917 = vadd.f32 %v916, 1.0
    %v918 = vrcp.pop %v917
    %v919 = vmul.f32 %v917, %v918
    %v920 = vsub.f32 1.0, %v919
    %v921 = vmul.f32 %v918, %v920
    %v922 = vadd.f32 %v918, %v921
    %vm923 = vweird.f32 %v917
    %vm924 = vweird.f32 %v918
    %vm925 = vmor %vm923, %vm924
    %v926 = vsel %vm925, %v918, %v922
    %v927 = vand.u32 2147483647, %v917
    %vm928 = vcmp.eq.f32.partialorder %v927, 8.507059e+37
    %v929 = vand.u32 %v917, 2147483648
    %v930 = vor.u32 1.1754944e-38, %v929
    %v931 = vsel %vm928, %v930, %v926
    %v932 = vmul.f32 1.0, %v931
    %v933 = vadd.f32 %v257, %v891
    %v934 = vxor.u32 %v933, 2147483648
    %v935 = vmul.f32 %v934, 1.442695
    %v936 = vpow.pop %v935
    %v937 = vadd.f32 %v936, 1.0
    %v938 = vrcp.pop %v937
    %v939 = vmul.f32 %v937, %v938
    %v940 = vsub.f32 1.0, %v939
    %v941 = vmul.f32 %v938, %v940
    %v942 = vadd.f32 %v938, %v941
    %vm943 = vweird.f32 %v937
    %vm944 = vweird.f32 %v938
    %vm945 = vmor %vm943, %vm944
    %v946 = vsel %vm945, %v938, %v942
    %v947 = vand.u32 2147483647, %v937
    %vm948 = vcmp.eq.f32.partialorder %v947, 8.507059e+37
    %v949 = vand.u32 %v937, 2147483648
    %v950 = vor.u32 1.1754944e-38, %v949
    %v951 = vsel %vm948, %v950, %v946
    %v952 = vmul.f32 1.0, %v951
    %v953 = vmul.f32 %v932, %v911
    %v954 = vadd.f32 %v280, %v953
    %v955 = vtanh.pop %v954
    %v956 = vsub.f32 1.0, %v952
    %v957 = vmul.f32 %v956, %v955
    %v958 = vmul.f32 %v952, %v850
    %v959 = vadd.f32 %v957, %v958
    %vm960 = vcmp.gt.s32.totalorder %v331, 4
    %v961 = vsel %vm960, 1, 0
    %962 = vset.pattern.permute.xlu0 0
    %963 = vperm.xlu0 %962, %v961
    %v964 = vpop.permute.xlu0 %963
    %vm965 = vcmp.eq.s32.totalorder %v964, 1
    %v966 = vsel %vm965, %v959, 0.0
    %v967 = vsel %vm965, %v959, %v850
    %968 = vst [vmem:[#allocation2 + $0x4] sm:$0x1] %v966
    %969 = vst [vmem:[#allocation2 + $0xb] sm:$0x2] %v966
    %970 = vmatpush.msra.mxu0 %v327
    %971 = vmatpush.msra.mxu0 %v324
    %972 = vmatpush.msra.mxu0 %v321
    %973 = vmatpush.msra.mxu0 %v318
    %974 = vmatpush.msra.mxu0 %v315
    %975 = vmatpush.msra.mxu0 %v312
    %976 = vmatpush.msra.mxu0 %v309
    %977 = vmatpush.msra.mxu0 %v306
    %978 = vmatpush.msra.mxu0 %v303
    %979 = vmatpush.msra.mxu0 %v300
    %980 = vmatpush.msra.mxu0 %v297
    %981 = vmatpush.msra.mxu0 %v294
    %982 = vmatpush.msra.mxu0 %v291
    %983 = vmatpush.msra.mxu0 %v288
    %984 = vmatpush.msra.mxu0 %v285
    %985 = vmatpush.msra.mxu0 %v282
    %986 = vmatmul.f32.gmra.mxu0 %v967
    %v987 = vpop.f32.mrf.mxu0
    %v988 = vadd.f32 %v334, %v987
    %989 = vdwg.mxu0
    %990 = vmatpush.msra.mxu0 %v328
    %991 = vmatpush.msra.mxu0 %v325
    %992 = vmatpush.msra.mxu0 %v322
    %993 = vmatpush.msra.mxu0 %v319
    %994 = vmatpush.msra.mxu0 %v316
    %995 = vmatpush.msra.mxu0 %v313
    %996 = vmatpush.msra.mxu0 %v310
    %997 = vmatpush.msra.mxu0 %v307
    %998 = vmatpush.msra.mxu0 %v304
    %999 = vmatpush.msra.mxu0 %v301
    %1000 = vmatpush.msra.mxu0 %v298
    %1001 = vmatpush.msra.mxu0 %v295
    %1002 = vmatpush.msra.mxu0 %v292
    %1003 = vmatpush.msra.mxu0 %v289
    %1004 = vmatpush.msra.mxu0 %v286
    %1005 = vmatpush.msra.mxu0 %v283
    %1006 = vmatmul.f32.gmra.mxu0 %v967
    %v1007 = vpop.f32.mrf.mxu0
    %v1008 = vadd.f32 %v335, %v1007
    %1009 = vdwg.mxu0
    %1010 = vmatpush.msra.mxu0 %v329
    %1011 = vmatpush.msra.mxu0 %v326
    %1012 = vmatpush.msra.mxu0 %v323
    %1013 = vmatpush.msra.mxu0 %v320
    %1014 = vmatpush.msra.mxu0 %v317
    %1015 = vmatpush.msra.mxu0 %v314
    %1016 = vmatpush.msra.mxu0 %v311
    %1017 = vmatpush.msra.mxu0 %v308
    %1018 = vmatpush.msra.mxu0 %v305
    %1019 = vmatpush.msra.mxu0 %v302
    %1020 = vmatpush.msra.mxu0 %v299
    %1021 = vmatpush.msra.mxu0 %v296
    %1022 = vmatpush.msra.mxu0 %v293
    %1023 = vmatpush.msra.mxu0 %v290
    %1024 = vmatpush.msra.mxu0 %v287
    %1025 = vmatpush.msra.mxu0 %v284
    %1026 = vmatmul.f32.gmra.mxu0 %v967
    %v1027 = vpop.f32.mrf.mxu0
    %v1028 = vadd.f32 %v336, %v1027
    %1029 = vdwg.mxu0
    %v1031 = vrot.slane %v988, 6
    %v1033 = vadd.f32 %v234, %v1031
    %v1034 = vxor.u32 %v1033, 2147483648
    %v1035 = vmul.f32 %v1034, 1.442695
    %v1036 = vpow.pop %v1035
    %v1037 = vadd.f32 %v1036, 1.0
    %v1038 = vrcp.pop %v1037
    %v1039 = vmul.f32 %v1037, %v1038
    %v1040 = vsub.f32 1.0, %v1039
    %v1041 = vmul.f32 %v1038, %v1040
    %v1042 = vadd.f32 %v1038, %v1041
    %vm1043 = vweird.f32 %v1037
    %vm1044 = vweird.f32 %v1038
    %vm1045 = vmor %vm1043, %vm1044
    %v1046 = vsel %vm1045, %v1038, %v1042
    %v1047 = vand.u32 2147483647, %v1037
    %vm1048 = vcmp.eq.f32.partialorder %v1047, 8.507059e+37
    %v1049 = vand.u32 %v1037, 2147483648
    %v1050 = vor.u32 1.1754944e-38, %v1049
    %v1051 = vsel %vm1048, %v1050, %v1046
    %v1052 = vmul.f32 1.0, %v1051
    %v1054 = vrot.slane %v1008, 6
    %v1056 = vadd.f32 %v257, %v1054
    %v1057 = vxor.u32 %v1056, 2147483648
    %v1058 = vmul.f32 %v1057, 1.442695
    %v1059 = vpow.pop %v1058
    %v1060 = vadd.f32 %v1059, 1.0
    %v1061 = vrcp.pop %v1060
    %v1062 = vmul.f32 %v1060, %v1061
    %v1063 = vsub.f32 1.0, %v1062
    %v1064 = vmul.f32 %v1061, %v1063
    %v1065 = vadd.f32 %v1061, %v1064
    %vm1066 = vweird.f32 %v1060
    %vm1067 = vweird.f32 %v1061
    %vm1068 = vmor %vm1066, %vm1067
    %v1069 = vsel %vm1068, %v1061, %v1065
    %v1070 = vand.u32 2147483647, %v1060
    %vm1071 = vcmp.eq.f32.partialorder %v1070, 8.507059e+37
    %v1072 = vand.u32 %v1060, 2147483648
    %v1073 = vor.u32 1.1754944e-38, %v1072
    %v1074 = vsel %vm1071, %v1073, %v1069
    %v1075 = vmul.f32 1.0, %v1074
    %v1077 = vrot.slane %v1028, 6
    %v1079 = vmul.f32 %v1052, %v1077
    %v1080 = vadd.f32 %v280, %v1079
    %v1081 = vtanh.pop %v1080
    %v1082 = vsub.f32 1.0, %v1075
    %v1083 = vmul.f32 %v1082, %v1081
    %v1085 = vrot.slane %v967, 6
    %v1087 = vmul.f32 %v1075, %v1085
    %v1088 = vadd.f32 %v1083, %v1087
    %vm1089 = vcmp.gt.s32.totalorder %v331, 5
    %v1090 = vsel %vm1089, 1, 0
    %1091 = vset.pattern.permute.xlu0 0
    %1092 = vperm.xlu0 %1091, %v1090
    %v1093 = vpop.permute.xlu0 %1092
    %vm1094 = vcmp.eq.s32.totalorder %v1093, 1
    %v1096 = vrot.slane %v1088, 2
    %v1098 = vsel %vm1094, %v1096, 0.0
    %v1099 = vsel %vm1094, %v1096, %v967
    %1100 = vst [vmem:[#allocation2 + $0x5] sm:$0x1] %v1098
    %1101 = vst [vmem:[#allocation2 + $0xc] sm:$0x2] %v1098
    %1102 = vmatpush.msra.mxu0 %v327
    %1103 = vmatpush.msra.mxu0 %v324
    %1104 = vmatpush.msra.mxu0 %v321
    %1105 = vmatpush.msra.mxu0 %v318
    %1106 = vmatpush.msra.mxu0 %v315
    %1107 = vmatpush.msra.mxu0 %v312
    %1108 = vmatpush.msra.mxu0 %v309
    %1109 = vmatpush.msra.mxu0 %v306
    %1110 = vmatpush.msra.mxu0 %v303
    %1111 = vmatpush.msra.mxu0 %v300
    %1112 = vmatpush.msra.mxu0 %v297
    %1113 = vmatpush.msra.mxu0 %v294
    %1114 = vmatpush.msra.mxu0 %v291
    %1115 = vmatpush.msra.mxu0 %v288
    %1116 = vmatpush.msra.mxu0 %v285
    %1117 = vmatpush.msra.mxu0 %v282
    %1118 = vmatmul.f32.gmra.mxu0 %v1099
    %v1119 = vpop.f32.mrf.mxu0
    %v1120 = vadd.f32 %v334, %v1119
    %1121 = vdwg.mxu0
    %1122 = vmatpush.msra.mxu0 %v328
    %1123 = vmatpush.msra.mxu0 %v325
    %1124 = vmatpush.msra.mxu0 %v322
    %1125 = vmatpush.msra.mxu0 %v319
    %1126 = vmatpush.msra.mxu0 %v316
    %1127 = vmatpush.msra.mxu0 %v313
    %1128 = vmatpush.msra.mxu0 %v310
    %1129 = vmatpush.msra.mxu0 %v307
    %1130 = vmatpush.msra.mxu0 %v304
    %1131 = vmatpush.msra.mxu0 %v301
    %1132 = vmatpush.msra.mxu0 %v298
    %1133 = vmatpush.msra.mxu0 %v295
    %1134 = vmatpush.msra.mxu0 %v292
    %1135 = vmatpush.msra.mxu0 %v289
    %1136 = vmatpush.msra.mxu0 %v286
    %1137 = vmatpush.msra.mxu0 %v283
    %1138 = vmatmul.f32.gmra.mxu0 %v1099
    %v1139 = vpop.f32.mrf.mxu0
    %v1140 = vadd.f32 %v335, %v1139
    %1141 = vdwg.mxu0
    %1142 = vmatpush.msra.mxu0 %v329
    %1143 = vmatpush.msra.mxu0 %v326
    %1144 = vmatpush.msra.mxu0 %v323
    %1145 = vmatpush.msra.mxu0 %v320
    %1146 = vmatpush.msra.mxu0 %v317
    %1147 = vmatpush.msra.mxu0 %v314
    %1148 = vmatpush.msra.mxu0 %v311
    %1149 = vmatpush.msra.mxu0 %v308
    %1150 = vmatpush.msra.mxu0 %v305
    %1151 = vmatpush.msra.mxu0 %v302
    %1152 = vmatpush.msra.mxu0 %v299
    %1153 = vmatpush.msra.mxu0 %v296
    %1154 = vmatpush.msra.mxu0 %v293
    %1155 = vmatpush.msra.mxu0 %v290
    %1156 = vmatpush.msra.mxu0 %v287
    %1157 = vmatpush.msra.mxu0 %v284
    %1158 = vmatmul.f32.gmra.mxu0 %v1099
    %v1159 = vpop.f32.mrf.mxu0
    %v1160 = vadd.f32 %v336, %v1159
    %1161 = vdwg.mxu0
    %v1163 = vrot.slane %v1120, 4
    %v1165 = vadd.f32 %v234, %v1163
    %v1166 = vxor.u32 %v1165, 2147483648
    %v1167 = vmul.f32 %v1166, 1.442695
    %v1168 = vpow.pop %v1167
    %v1169 = vadd.f32 %v1168, 1.0
    %v1170 = vrcp.pop %v1169
    %v1171 = vmul.f32 %v1169, %v1170
    %v1172 = vsub.f32 1.0, %v1171
    %v1173 = vmul.f32 %v1170, %v1172
    %v1174 = vadd.f32 %v1170, %v1173
    %vm1175 = vweird.f32 %v1169
    %vm1176 = vweird.f32 %v1170
    %vm1177 = vmor %vm1175, %vm1176
    %v1178 = vsel %vm1177, %v1170, %v1174
    %v1179 = vand.u32 2147483647, %v1169
    %vm1180 = vcmp.eq.f32.partialorder %v1179, 8.507059e+37
    %v1181 = vand.u32 %v1169, 2147483648
    %v1182 = vor.u32 1.1754944e-38, %v1181
    %v1183 = vsel %vm1180, %v1182, %v1178
    %v1184 = vmul.f32 1.0, %v1183
    %v1186 = vrot.slane %v1140, 4
    %v1188 = vadd.f32 %v257, %v1186
    %v1189 = vxor.u32 %v1188, 2147483648
    %v1190 = vmul.f32 %v1189, 1.442695
    %v1191 = vpow.pop %v1190
    %v1192 = vadd.f32 %v1191, 1.0
    %v1193 = vrcp.pop %v1192
    %v1194 = vmul.f32 %v1192, %v1193
    %v1195 = vsub.f32 1.0, %v1194
    %v1196 = vmul.f32 %v1193, %v1195
    %v1197 = vadd.f32 %v1193, %v1196
    %vm1198 = vweird.f32 %v1192
    %vm1199 = vweird.f32 %v1193
    %vm1200 = vmor %vm1198, %vm1199
    %v1201 = vsel %vm1200, %v1193, %v1197
    %v1202 = vand.u32 2147483647, %v1192
    %vm1203 = vcmp.eq.f32.partialorder %v1202, 8.507059e+37
    %v1204 = vand.u32 %v1192, 2147483648
    %v1205 = vor.u32 1.1754944e-38, %v1204
    %v1206 = vsel %vm1203, %v1205, %v1201
    %v1207 = vmul.f32 1.0, %v1206
    %v1209 = vrot.slane %v1160, 4
    %v1211 = vmul.f32 %v1184, %v1209
    %v1212 = vadd.f32 %v280, %v1211
    %v1213 = vtanh.pop %v1212
    %v1214 = vsub.f32 1.0, %v1207
    %v1215 = vmul.f32 %v1214, %v1213
    %v1217 = vrot.slane %v1099, 4
    %v1219 = vmul.f32 %v1207, %v1217
    %v1220 = vadd.f32 %v1215, %v1219
    %vm1221 = vcmp.gt.s32.totalorder %v331, 6
    %v1222 = vsel %vm1221, 1, 0
    %1223 = vset.pattern.permute.xlu0 0
    %1224 = vperm.xlu0 %1223, %v1222
    %v1225 = vpop.permute.xlu0 %1224
    %vm1226 = vcmp.eq.s32.totalorder %v1225, 1
    %v1228 = vrot.slane %v1220, 4
    %v1230 = vsel %vm1226, %v1228, 0.0
    %v1231 = vsel %vm1226, %v1228, %v1099
    %1232 = vst [vmem:[#allocation2 + $0x6] sm:$0x1] %v1230
    %1233 = vst [vmem:[#allocation2 + $0xd] sm:$0x2] %v1230
    %1234 = vmatpush.msra.mxu0 %v327
    %1235 = vmatpush.msra.mxu0 %v324
    %1236 = vmatpush.msra.mxu0 %v321
    %1237 = vmatpush.msra.mxu0 %v318
    %1238 = vmatpush.msra.mxu0 %v315
    %1239 = vmatpush.msra.mxu0 %v312
    %1240 = vmatpush.msra.mxu0 %v309
    %1241 = vmatpush.msra.mxu0 %v306
    %1242 = vmatpush.msra.mxu0 %v303
    %1243 = vmatpush.msra.mxu0 %v300
    %1244 = vmatpush.msra.mxu0 %v297
    %1245 = vmatpush.msra.mxu0 %v294
    %1246 = vmatpush.msra.mxu0 %v291
    %1247 = vmatpush.msra.mxu0 %v288
    %1248 = vmatpush.msra.mxu0 %v285
    %1249 = vmatpush.msra.mxu0 %v282
    %1250 = vmatmul.f32.gmra.mxu0 %v1231
    %v1251 = vpop.f32.mrf.mxu0
    %v1252 = vadd.f32 %v334, %v1251
    %1253 = vdwg.mxu0
    %1254 = vmatpush.msra.mxu0 %v328
    %1255 = vmatpush.msra.mxu0 %v325
    %1256 = vmatpush.msra.mxu0 %v322
    %1257 = vmatpush.msra.mxu0 %v319
    %1258 = vmatpush.msra.mxu0 %v316
    %1259 = vmatpush.msra.mxu0 %v313
    %1260 = vmatpush.msra.mxu0 %v310
    %1261 = vmatpush.msra.mxu0 %v307
    %1262 = vmatpush.msra.mxu0 %v304
    %1263 = vmatpush.msra.mxu0 %v301
    %1264 = vmatpush.msra.mxu0 %v298
    %1265 = vmatpush.msra.mxu0 %v295
    %1266 = vmatpush.msra.mxu0 %v292
    %1267 = vmatpush.msra.mxu0 %v289
    %1268 = vmatpush.msra.mxu0 %v286
    %1269 = vmatpush.msra.mxu0 %v283
    %1270 = vmatmul.f32.gmra.mxu0 %v1231
    %v1271 = vpop.f32.mrf.mxu0
    %v1272 = vadd.f32 %v335, %v1271
    %1273 = vdwg.mxu0
    %1274 = vmatpush.msra.mxu0 %v329
    %1275 = vmatpush.msra.mxu0 %v326
    %1276 = vmatpush.msra.mxu0 %v323
    %1277 = vmatpush.msra.mxu0 %v320
    %1278 = vmatpush.msra.mxu0 %v317
    %1279 = vmatpush.msra.mxu0 %v314
    %1280 = vmatpush.msra.mxu0 %v311
    %1281 = vmatpush.msra.mxu0 %v308
    %1282 = vmatpush.msra.mxu0 %v305
    %1283 = vmatpush.msra.mxu0 %v302
    %1284 = vmatpush.msra.mxu0 %v299
    %1285 = vmatpush.msra.mxu0 %v296
    %1286 = vmatpush.msra.mxu0 %v293
    %1287 = vmatpush.msra.mxu0 %v290
    %1288 = vmatpush.msra.mxu0 %v287
    %1289 = vmatpush.msra.mxu0 %v284
    %1290 = vmatmul.f32.gmra.mxu0 %v1231
    %v1291 = vpop.f32.mrf.mxu0
    %v1292 = vadd.f32 %v336, %v1291
    %1293 = vdwg.mxu0
    %v1295 = vrot.slane %v1252, 2
    %v1297 = vadd.f32 %v234, %v1295
    %v1298 = vxor.u32 %v1297, 2147483648
    %v1299 = vmul.f32 %v1298, 1.442695
    %v1300 = vpow.pop %v1299
    %v1301 = vadd.f32 %v1300, 1.0
    %v1302 = vrcp.pop %v1301
    %v1303 = vmul.f32 %v1301, %v1302
    %v1304 = vsub.f32 1.0, %v1303
    %v1305 = vmul.f32 %v1302, %v1304
    %v1306 = vadd.f32 %v1302, %v1305
    %vm1307 = vweird.f32 %v1301
    %vm1308 = vweird.f32 %v1302
    %vm1309 = vmor %vm1307, %vm1308
    %v1310 = vsel %vm1309, %v1302, %v1306
    %v1311 = vand.u32 2147483647, %v1301
    %vm1312 = vcmp.eq.f32.partialorder %v1311, 8.507059e+37
    %v1313 = vand.u32 %v1301, 2147483648
    %v1314 = vor.u32 1.1754944e-38, %v1313
    %v1315 = vsel %vm1312, %v1314, %v1310
    %v1316 = vmul.f32 1.0, %v1315
    %v1318 = vrot.slane %v1272, 2
    %v1320 = vadd.f32 %v257, %v1318
    %v1321 = vxor.u32 %v1320, 2147483648
    %v1322 = vmul.f32 %v1321, 1.442695
    %v1323 = vpow.pop %v1322
    %v1324 = vadd.f32 %v1323, 1.0
    %v1325 = vrcp.pop %v1324
    %v1326 = vmul.f32 %v1324, %v1325
    %v1327 = vsub.f32 1.0, %v1326
    %v1328 = vmul.f32 %v1325, %v1327
    %v1329 = vadd.f32 %v1325, %v1328
    %vm1330 = vweird.f32 %v1324
    %vm1331 = vweird.f32 %v1325
    %vm1332 = vmor %vm1330, %vm1331
    %v1333 = vsel %vm1332, %v1325, %v1329
    %v1334 = vand.u32 2147483647, %v1324
    %vm1335 = vcmp.eq.f32.partialorder %v1334, 8.507059e+37
    %v1336 = vand.u32 %v1324, 2147483648
    %v1337 = vor.u32 1.1754944e-38, %v1336
    %v1338 = vsel %vm1335, %v1337, %v1333
    %v1339 = vmul.f32 1.0, %v1338
    %v1341 = vrot.slane %v1292, 2
    %v1343 = vmul.f32 %v1316, %v1341
    %v1344 = vadd.f32 %v280, %v1343
    %v1345 = vtanh.pop %v1344
    %v1346 = vsub.f32 1.0, %v1339
    %v1347 = vmul.f32 %v1346, %v1345
    %v1349 = vrot.slane %v1231, 2
    %v1351 = vmul.f32 %v1339, %v1349
    %v1352 = vadd.f32 %v1347, %v1351
    %vm1353 = vcmp.gt.s32.totalorder %v331, 7
    %v1354 = vsel %vm1353, 1, 0
    %1355 = vset.pattern.permute.xlu0 0
    %1356 = vperm.xlu0 %1355, %v1354
    %v1357 = vpop.permute.xlu0 %1356
    %vm1358 = vcmp.eq.s32.totalorder %v1357, 1
    %v1360 = vrot.slane %v1352, 6
    %v1362 = vsel %vm1358, %v1360, 0.0
    %v1363 = vsel %vm1358, %v1360, %v1231
    %1364 = vst [vmem:[#allocation2 + $0x7] sm:$0x1] %v1362
    %1365 = vst [vmem:[#allocation2 + $0xe] sm:$0x2] %v1362
    %1366 = vst [vmem:[#allocation12] sm:$0x3] %v1363
    %v1367 = vld [vmem:[#allocation2] sm:$0xff]
    %v1368 = vld [vmem:[#allocation2 + $0x8] sm:$0xff]
    %v1369 = vld [vmem:[#allocation9] sm:$0xff]
    %v1370 = vld [vmem:[#allocation9 + $0x8] sm:$0xff]
    %v1371 = vld [vmem:[#allocation9 + $0x10] sm:$0xff]
    %v1372 = vld [vmem:[#allocation9 + $0x18] sm:$0xff]
    %v1373 = vld [vmem:[#allocation9 + $0x20] sm:$0xff]
    %v1374 = vld [vmem:[#allocation9 + $0x28] sm:$0xff]
    %v1375 = vld [vmem:[#allocation9 + $0x30] sm:$0xff]
    %v1376 = vld [vmem:[#allocation9 + $0x38] sm:$0xff]
    %v1377 = vld [vmem:[#allocation9 + $0x40] sm:$0xff]
    %v1378 = vld [vmem:[#allocation9 + $0x48] sm:$0xff]
    %v1379 = vld [vmem:[#allocation9 + $0x50] sm:$0xff]
    %v1380 = vld [vmem:[#allocation9 + $0x58] sm:$0xff]
    %v1381 = vld [vmem:[#allocation9 + $0x60] sm:$0xff]
    %v1382 = vld [vmem:[#allocation9 + $0x68] sm:$0xff]
    %v1383 = vld [vmem:[#allocation9 + $0x70] sm:$0xff]
    %v1384 = vld [vmem:[#allocation9 + $0x78] sm:$0xff]
    %v1385 = vld [vmem:[%s9] sm:$0x1]
    %v1387 = vperm.slane %v1385, 0
    %1389 = vmatpush.msra.mxu0 %v1384
    %1390 = vmatpush.msra.mxu0 %v1383
    %1391 = vmatpush.msra.mxu0 %v1382
    %1392 = vmatpush.msra.mxu0 %v1381
    %1393 = vmatpush.msra.mxu0 %v1380
    %1394 = vmatpush.msra.mxu0 %v1379
    %1395 = vmatpush.msra.mxu0 %v1378
    %1396 = vmatpush.msra.mxu0 %v1377
    %1397 = vmatpush.msra.mxu0 %v1376
    %1398 = vmatpush.msra.mxu0 %v1375
    %1399 = vmatpush.msra.mxu0 %v1374
    %1400 = vmatpush.msra.mxu0 %v1373
    %1401 = vmatpush.msra.mxu0 %v1372
    %1402 = vmatpush.msra.mxu0 %v1371
    %1403 = vmatpush.msra.mxu0 %v1370
    %1404 = vmatpush.msra.mxu0 %v1369
    %1405 = vmatmul.f32.gmra.mxu0 %v1367
    %v1406 = vpop.f32.mrf.mxu0
    %v1407 = vadd.f32 %v1387, %v1406
    %1408 = vmatmul.f32.gmra.mxu0 %v1368
    %v1409 = vpop.f32.mrf.mxu0
    %v1410 = vadd.f32 %v1387, %v1409
    %1411 = vdwg.mxu0
    %1412 = vmax.xlane.f32.xlu0 %v1407
    %v1413 = vpop.xlane.xlu0 %1412
    %1414 = vmax.xlane.f32.xlu0 %v1410
    %v1415 = vpop.xlane.xlu0 %1414
    %v1416 = vsub.f32 %v1407, %v1413
    %v1417 = vsub.f32 %v1410, %v1415
    %v1418 = vmul.f32 %v1416, 1.442695
    %v1419 = vpow.pop %v1418
    %v1420 = vmul.f32 %v1417, 1.442695
    %v1421 = vpow.pop %v1420
    %1422 = vadd.xlane.f32.xlu0 %v1419
    %v1423 = vpop.xlane.xlu0 %1422
    %1424 = vadd.xlane.f32.xlu0 %v1421
    %v1425 = vpop.xlane.xlu0 %1424
    %v1426 = vlog2.pop %v1423
    %v1427 = vmul.f32 %v1426, 0.6931472
    %v1428 = vlog2.pop %v1425
    %v1429 = vmul.f32 %v1428, 0.6931472
    %v1430 = vsub.f32 %v1416, %v1427
    %v1431 = vsub.f32 %v1417, %v1429
    %1432 = vst [vmem:[#allocation11] sm:$0xff] %v1430
    %1433 = vst [vmem:[#allocation11 + $0x8] sm:$0xff] %v1431
    // Predicated region
    $region58: #{tpu_custom_call.1} parent=1 // pred_check
      _
    $region59: #{tpu_custom_call.1} parent=1 // pred_check_branch
      %1435 = sbr.rel (0) target = $region61
    $region60: #{tpu_custom_call.1} parent=1 // pred_region
      %1437 = vsyncadd [#allocation5], 0
      %s1438 = sshll.u32 [#allocation11], 4
      %s1439 = int_to_ptr.vmem [resolvable:$true] %s1438
      %s1440 = sshll.u32 %s10, 4
      %s1441 = int_to_ptr.hbm [resolvable:$true] %s1440
      %1446 = dma.vmem_to_hbm [thread:$0]  %s1439, 256, %s1441, [#allocation5], 128, 128, 8
    $region61: #{tpu_custom_call.1} parent=1 // pred_fallthru
      _
    // Predicated region
    $region62: #{tpu_custom_call.1} parent=1 // pred_check
      _
    $region63: #{tpu_custom_call.1} parent=1 // pred_check_branch
      %1448 = sbr.rel (0) target = $region65
    $region64: #{tpu_custom_call.1} parent=1 // pred_region
      %1450 = vsyncadd [#allocation13], 0
      %s1452 = sshll.u32 [#allocation12], 4
      %s1453 = int_to_ptr.vmem [resolvable:$true] %s1452
      %s1454 = sshll.u32 %s11, 4
      %s1455 = int_to_ptr.hbm [resolvable:$true] %s1454
      %1457 = dma.vmem_to_hbm [thread:$0]  %s1453, 32, %s1455, [#allocation13]
    $region65: #{tpu_custom_call.1} parent=1 // pred_fallthru
      _
    // Predicated region
    $region66: #{tpu_custom_call.1} parent=1 // pred_check
      _
    $region67: #{tpu_custom_call.1} parent=1 // pred_check_branch
      %1459 = sbr.rel (0) target = $region69
    $region68: #{tpu_custom_call.1} parent=1 // pred_region
      %1461 = dma.done [#allocation5], 256
    $region69: #{tpu_custom_call.1} parent=1 // pred_fallthru
      _
    // Predicated region
    $region70: #{tpu_custom_call.1} parent=1 // pred_check
      _
    $region71: #{tpu_custom_call.1} parent=1 // pred_check_branch
      %1463 = sbr.rel (0) target = $region73
    $region72: #{tpu_custom_call.1} parent=1 // pred_region
      %1465 = dma.done [#allocation13], 32
    $region73: #{tpu_custom_call.1} parent=1 // pred_fallthru
      _
    %1466 = vsyncpa [#allocation4], 1
    %1467 = vsyncpa [#allocation7], 1
    %1468 = vsyncpa [#allocation10], 1
    %1469 = vsyncpa [#allocation5], 1
    %1470 = vsyncpa [#allocation13], 1

</llo_original>
